<compile_context>
chip_gen: v7x
topology: tpu7x:2x2x1
jax: 0.10.0
libtpu: 0.0.40
codegen_flags: <defaults>
</compile_context>

<pallas_src>
import functools
import math

import numpy as np

import jax
import jax.numpy as jnp
from jax.experimental import pallas as pl
from jax.experimental.pallas import tpu as pltpu


# ------------------------------ fused kernel ------------------------------

def _fused_kernel(x_ref, w1_ref, w2_ref, wmat_ref, bias_ref, mask_ref, o_ref,
                  *, B, N, D, C, F1, n_heads):
    f32 = jnp.float32
    BN = B * N
    Dh = D // n_heads

    # rows are ordered io*(B*N) + b*N + n  (io=0 -> "inputs", io=1 -> "outputs")
    x = x_ref[...]                                                # (2BN, C*4)

    # --- encoder stage 1: conv1(3x3,p=1)+ReLU+maxpool(2) as one matmul ----
    y = jnp.dot(x, w1_ref[...], preferred_element_type=f32)      # (2BN, 4*F1)
    m = jnp.maximum(jnp.maximum(y[:, 0:F1], y[:, F1:2 * F1]),
                    jnp.maximum(y[:, 2 * F1:3 * F1], y[:, 3 * F1:4 * F1]))
    pooled = jnp.maximum(m + bias_ref[0:1, 0:F1], 0.0)           # (2BN, F1)

    # --- encoder stage 2: conv2 centre tap + ReLU --------------------------
    feats = jnp.maximum(
        jnp.dot(pooled, w2_ref[...], preferred_element_type=f32)
        + bias_ref[1:2, 0:D], 0.0)                               # (2BN, D)

    inp = feats[0:BN, :]                                         # (BN, D), rows (b, n)
    outp = feats[BN:2 * BN, :]                                   # (BN, D)

    # --- transformation_learner folded into attention in_proj --------------
    # qkv = (inp@tliw + outp@tlow + tlb) @ W_inproj + b_inproj
    a_w = wmat_ref[:, 0:3 * D]                                   # tliw @ W_inproj
    b_w = wmat_ref[:, 3 * D:6 * D]                               # tlow @ W_inproj
    qkv = (jnp.dot(inp, a_w, preferred_element_type=f32)
           + jnp.dot(outp, b_w, preferred_element_type=f32)
           + bias_ref[2:3, 0:3 * D])                             # (BN, 3D)

    opw = wmat_ref[:, 6 * D:7 * D]                               # (D, D) out_proj
    mask = mask_ref[...]                                         # (BN, BN) additive

    # --- multi-head self-attention, all examples at once per head ----------
    common = jnp.zeros((BN, D), f32)
    for h in range(n_heads):
        lo = h * Dh
        qh = qkv[:, lo:lo + Dh]                                  # scale pre-folded
        kh = qkv[:, D + lo:D + lo + Dh]
        vh = qkv[:, 2 * D + lo:2 * D + lo + Dh]
        s = jax.lax.dot_general(qh, kh, (((1,), (1,)), ((), ())),
                                preferred_element_type=f32) + mask
        s = s - jnp.max(s, axis=-1, keepdims=True)
        e = jnp.exp(s)
        p = e / jnp.sum(e, axis=-1, keepdims=True)               # exact softmax
        head = jnp.dot(p, vh, preferred_element_type=f32)        # (BN, Dh)
        common = common + jnp.dot(head, opw[lo:lo + Dh, :],
                                  preferred_element_type=f32)    # (BN, D)

    # --- (rule_layer ∘ output_layer) pre-folded; out_proj bias absorbed ----
    rwf = wmat_ref[:, 7 * D:7 * D + C]                           # (D, C)
    out = (jnp.dot(inp + common, rwf, preferred_element_type=f32)
           + bias_ref[3:4, 0:C])                                 # (BN, C), rows (b, n)

    for b in range(B):
        o_ref[b] = out[b * N:(b + 1) * N, :].astype(o_ref.dtype)


# ------------------------------ forward pass ------------------------------

@functools.partial(jax.jit, static_argnames=("feature_dim", "n_heads"))
def multi_example_rule_inference_net(examples, params, *, feature_dim, n_heads):
    B, N, io, C, H, W = examples.shape
    assert io == 2 and H == 2 and W == 2, "module dims require 2x2 spatial input"
    D = feature_dim
    assert D % n_heads == 0
    Dh = D // n_heads
    F1 = params["conv1_w"].shape[0]                              # 64
    scale = 1.0 / math.sqrt(Dh)

    # ---- conv1 fold: four output positions as one (C*4, 4*F1) matrix ------
    w1 = params["conv1_w"]                                       # (F1, C, 3, 3)
    blocks = []
    for oh in range(2):
        for ow in range(2):
            # sub[o, c, ih, iw] = w1[o, c, ih - oh + 1, iw - ow + 1]
            sub = w1[:, :, 1 - oh:3 - oh, 1 - ow:3 - ow]
            blocks.append(jnp.transpose(sub, (1, 2, 3, 0)).reshape(C * 4, F1))
    w1cat = jnp.concatenate(blocks, axis=1)                      # (C*4, 4*F1)
    b1 = params["conv1_b"]                                       # (F1,)

    w2c = params["conv2_w"][:, :, 1, 1].T                        # (F1, D) centre tap
    b2 = params["conv2_b"]                                       # (D,)

    # ---- transformation learner (linear) folded into in_proj --------------
    tlw = params["tl_w"][:, :, 0]                                # (D, 2D)
    tliw, tlow = tlw[:, :D].T, tlw[:, D:].T                      # (D, D) each
    tlb = params["tl_b"]                                         # (D,)

    qscale = jnp.concatenate([jnp.full((D,), scale, jnp.float32),
                              jnp.ones((2 * D,), jnp.float32)])
    ipw = params["in_proj_w"].T * qscale[None, :]                # (D, 3D), Q pre-scaled
    ipb = params["in_proj_b"] * qscale                           # (3D,)

    a_w = tliw @ ipw                                             # (D, 3D)
    b_w = tlow @ ipw                                             # (D, 3D)
    qkv_b = tlb @ ipw + ipb                                      # (3D,)

    opw = params["out_proj_w"].T                                 # (D, D)
    opb = params["out_proj_b"]                                   # (D,)

    # ---- rule_layer ∘ output_layer (both linear, nothing in between) ------
    rwf = params["rule_w"].T @ params["out_w"].T                 # (D, C)
    rbf = params["rule_b"] @ params["out_w"].T + params["out_b"]  # (C,)
    rb_final = opb @ rwf + rbf                                   # absorb out_proj bias

    wmat = jnp.concatenate([a_w, b_w, opw, rwf], axis=1)         # (D, 7D + C)

    Wb = max(F1, 3 * D, C)
    def _row(v):
        v = v.astype(jnp.float32)
        return jnp.pad(v, (0, Wb - v.shape[0]))[None, :]
    biases = jnp.concatenate([_row(b1), _row(b2), _row(qkv_b), _row(rb_final)],
                             axis=0)                             # (4, Wb)

    # ---- input rows ordered (io, b, n); pixels (c,h,w) flattened to lanes --
    x_rows = jnp.transpose(examples, (2, 0, 1, 3, 4, 5)).reshape(2 * B * N, C * H * W)

    # ---- per-example block mask (rows i, j attend iff i % N == j % N) -----
    idx = np.arange(B * N) % N
    attn_mask = jnp.asarray(
        np.where(idx[:, None] == idx[None, :], 0.0, -1e30), dtype=jnp.float32)

    kernel = functools.partial(_fused_kernel, B=B, N=N, D=D, C=C, F1=F1,
                               n_heads=n_heads)

    # Single kernel invocation (no grid): everything is VMEM-resident, one DMA
    # per (packed) input, zero per-step pipeline overhead, output already in
    # its final (B, N, C) layout.
    return pl.pallas_call(
        kernel,
        out_shape=jax.ShapeDtypeStruct((B, N, C), jnp.float32),
        in_specs=[pl.BlockSpec(memory_space=pltpu.MemorySpace.VMEM)] * 6,
        out_specs=pl.BlockSpec(memory_space=pltpu.MemorySpace.VMEM),
    )(x_rows, w1cat, w2c, wmat, biases, attn_mask)


# ------------------------------ parameters ------------------------------

def init_params(key, input_dim, feature_dim):
    D = feature_dim
    ks = jax.random.split(key, 14)

    def w(k, shape, scale=0.1):
        return scale * jax.random.normal(k, shape, dtype=jnp.float32)

    return dict(
        conv1_w=w(ks[0], (64, input_dim, 3, 3)),
        conv1_b=w(ks[1], (64,)),
        conv2_w=w(ks[2], (D, 64, 3, 3)),
        conv2_b=w(ks[3], (D,)),
        tl_w=w(ks[4], (D, 2 * D, 1)),
        tl_b=w(ks[5], (D,)),
        in_proj_w=w(ks[6], (3 * D, D)),
        in_proj_b=w(ks[7], (3 * D,)),
        out_proj_w=w(ks[8], (D, D)),
        out_proj_b=w(ks[9], (D,)),
        rule_w=w(ks[10], (D, D)),
        rule_b=w(ks[11], (D,)),
        out_w=w(ks[12], (input_dim, D)),
        out_b=w(ks[13], (input_dim,)),
    )


if __name__ == "__main__":
    input_dim, feature_dim, n_heads = 4, 32, 4
    B, N, H, W = 2, 3, 2, 2   # batch, num_examples, spatial (must be 2x2, see header)

    key = jax.random.PRNGKey(0)
    k_x, k_p = jax.random.split(key)
    examples = jax.random.normal(k_x, (B, N, 2, input_dim, H, W), dtype=jnp.float32)
    params = init_params(k_p, input_dim, feature_dim)

    out = multi_example_rule_inference_net(
        examples, params, feature_dim=feature_dim, n_heads=n_heads)
    out = jax.block_until_ready(out)
    assert out.shape == (B, N, input_dim)
    assert bool(jnp.all(jnp.isfinite(out)))
    print("KERNEL_OK")
</pallas_src>

<mosaic_0001>
module attributes {stable_mosaic.version = 11 : i64} {
  func.func @_fused_kernel(%arg0: memref<12x16xf32, #tpu.memory_space<vmem>>, %arg1: memref<16x256xf32, #tpu.memory_space<vmem>>, %arg2: memref<64x32xf32, #tpu.memory_space<vmem>>, %arg3: memref<32x228xf32, #tpu.memory_space<vmem>>, %arg4: memref<4x96xf32, #tpu.memory_space<vmem>>, %arg5: memref<6x6xf32, #tpu.memory_space<vmem>>, %arg6: memref<2x3x4xf32, #tpu.memory_space<vmem>>) attributes {dimension_semantics = [], scalar_prefetch = 0 : i64, scratch_operands = 0 : i64, tpu.core_type = #tpu.core_type<tc>} {
    %c0 = arith.constant 0 : index
    %c0_0 = arith.constant 0 : index
    %0 = vector.load %arg0[%c0, %c0_0] : memref<12x16xf32, #tpu.memory_space<vmem>>, vector<12x16xf32>
    %c0_1 = arith.constant 0 : index
    %c0_2 = arith.constant 0 : index
    %1 = vector.load %arg1[%c0_1, %c0_2] : memref<16x256xf32, #tpu.memory_space<vmem>>, vector<16x256xf32>
    %cst = arith.constant dense<0.000000e+00> : vector<12x256xf32>
    %2 = tpu.matmul %0, %1, %cst {dimension_numbers = #tpu.dot_dimension_numbers<[1], [0], [0], [1], [0, 0, 1, 1], [], []>} : vector<12x16xf32>, vector<16x256xf32>, vector<12x256xf32> -> vector<12x256xf32>
    %3 = vector.extract_strided_slice %2 {offsets = [0, 0], sizes = [12, 64], strides = [1, 1]} : vector<12x256xf32> to vector<12x64xf32>
    %4 = vector.extract_strided_slice %2 {offsets = [0, 64], sizes = [12, 64], strides = [1, 1]} : vector<12x256xf32> to vector<12x64xf32>
    %5 = arith.maximumf %3, %4 : vector<12x64xf32>
    %6 = vector.extract_strided_slice %2 {offsets = [0, 128], sizes = [12, 64], strides = [1, 1]} : vector<12x256xf32> to vector<12x64xf32>
    %7 = vector.extract_strided_slice %2 {offsets = [0, 192], sizes = [12, 64], strides = [1, 1]} : vector<12x256xf32> to vector<12x64xf32>
    %8 = arith.maximumf %6, %7 : vector<12x64xf32>
    %9 = arith.maximumf %5, %8 : vector<12x64xf32>
    %c0_3 = arith.constant 0 : index
    %c0_4 = arith.constant 0 : index
    %10 = vector.load %arg4[%c0_3, %c0_4] : memref<4x96xf32, #tpu.memory_space<vmem>>, vector<1x64xf32>
    %11 = vector.broadcast %10 : vector<1x64xf32> to vector<12x64xf32>
    %12 = arith.addf %9, %11 : vector<12x64xf32>
    %cst_5 = arith.constant 0.000000e+00 : f32
    %13 = vector.broadcast %cst_5 : f32 to vector<12x64xf32>
    %14 = arith.maximumf %12, %13 : vector<12x64xf32>
    %c0_6 = arith.constant 0 : index
    %c0_7 = arith.constant 0 : index
    %15 = vector.load %arg2[%c0_6, %c0_7] : memref<64x32xf32, #tpu.memory_space<vmem>>, vector<64x32xf32>
    %cst_8 = arith.constant dense<0.000000e+00> : vector<12x32xf32>
    %16 = tpu.matmul %14, %15, %cst_8 {dimension_numbers = #tpu.dot_dimension_numbers<[1], [0], [0], [1], [0, 0, 1, 1], [], []>} : vector<12x64xf32>, vector<64x32xf32>, vector<12x32xf32> -> vector<12x32xf32>
    %c1 = arith.constant 1 : index
    %c0_9 = arith.constant 0 : index
    %17 = vector.load %arg4[%c1, %c0_9] : memref<4x96xf32, #tpu.memory_space<vmem>>, vector<1x32xf32>
    %18 = vector.broadcast %17 : vector<1x32xf32> to vector<12x32xf32>
    %19 = arith.addf %16, %18 : vector<12x32xf32>
    %cst_10 = arith.constant 0.000000e+00 : f32
    %20 = vector.broadcast %cst_10 : f32 to vector<12x32xf32>
    %21 = arith.maximumf %19, %20 : vector<12x32xf32>
    %22 = vector.extract_strided_slice %21 {offsets = [0, 0], sizes = [6, 32], strides = [1, 1]} : vector<12x32xf32> to vector<6x32xf32>
    %23 = vector.extract_strided_slice %21 {offsets = [6, 0], sizes = [6, 32], strides = [1, 1]} : vector<12x32xf32> to vector<6x32xf32>
    %c0_11 = arith.constant 0 : index
    %c0_12 = arith.constant 0 : index
    %24 = vector.load %arg3[%c0_11, %c0_12] : memref<32x228xf32, #tpu.memory_space<vmem>>, vector<32x96xf32>
    %c0_13 = arith.constant 0 : index
    %c96 = arith.constant 96 : index
    %25 = vector.load %arg3[%c0_13, %c96] : memref<32x228xf32, #tpu.memory_space<vmem>>, vector<32x96xf32>
    %cst_14 = arith.constant dense<0.000000e+00> : vector<6x96xf32>
    %26 = tpu.matmul %22, %24, %cst_14 {dimension_numbers = #tpu.dot_dimension_numbers<[1], [0], [0], [1], [0, 0, 1, 1], [], []>} : vector<6x32xf32>, vector<32x96xf32>, vector<6x96xf32> -> vector<6x96xf32>
    %cst_15 = arith.constant dense<0.000000e+00> : vector<6x96xf32>
    %27 = tpu.matmul %23, %25, %cst_15 {dimension_numbers = #tpu.dot_dimension_numbers<[1], [0], [0], [1], [0, 0, 1, 1], [], []>} : vector<6x32xf32>, vector<32x96xf32>, vector<6x96xf32> -> vector<6x96xf32>
    %28 = arith.addf %26, %27 : vector<6x96xf32>
    %c2 = arith.constant 2 : index
    %c0_16 = arith.constant 0 : index
    %29 = vector.load %arg4[%c2, %c0_16] : memref<4x96xf32, #tpu.memory_space<vmem>>, vector<1x96xf32>
    %30 = vector.broadcast %29 : vector<1x96xf32> to vector<6x96xf32>
    %31 = arith.addf %28, %30 : vector<6x96xf32>
    %c0_17 = arith.constant 0 : index
    %c192 = arith.constant 192 : index
    %32 = vector.load %arg3[%c0_17, %c192] : memref<32x228xf32, #tpu.memory_space<vmem>>, vector<32x32xf32>
    %c0_18 = arith.constant 0 : index
    %c0_19 = arith.constant 0 : index
    %33 = vector.load %arg5[%c0_18, %c0_19] : memref<6x6xf32, #tpu.memory_space<vmem>>, vector<6x6xf32>
    %cst_20 = arith.constant 0.000000e+00 : f32
    %34 = vector.broadcast %cst_20 : f32 to vector<6x32xf32>
    %35 = vector.extract_strided_slice %31 {offsets = [0, 0], sizes = [6, 8], strides = [1, 1]} : vector<6x96xf32> to vector<6x8xf32>
    %36 = vector.extract_strided_slice %31 {offsets = [0, 32], sizes = [6, 8], strides = [1, 1]} : vector<6x96xf32> to vector<6x8xf32>
    %37 = vector.extract_strided_slice %31 {offsets = [0, 64], sizes = [6, 8], strides = [1, 1]} : vector<6x96xf32> to vector<6x8xf32>
    %cst_21 = arith.constant dense<0.000000e+00> : vector<6x6xf32>
    %38 = tpu.matmul %35, %36, %cst_21 {dimension_numbers = #tpu.dot_dimension_numbers<[1], [1], [0], [0], [0, 0, 1, 0], [], []>} : vector<6x8xf32>, vector<6x8xf32>, vector<6x6xf32> -> vector<6x6xf32>
    %39 = arith.addf %38, %33 : vector<6x6xf32>
    %cst_22 = arith.constant dense<0xFF800000> : vector<6xf32>
    %40 = vector.multi_reduction <maximumf>, %39, %cst_22 [1] : vector<6x6xf32> to vector<6xf32>
    %41 = vector.shape_cast %40 : vector<6xf32> to vector<6x1xf32>
    %42 = vector.broadcast %41 : vector<6x1xf32> to vector<6x6xf32>
    %43 = arith.subf %39, %42 : vector<6x6xf32>
    %44 = math.exp %43 : vector<6x6xf32>
    %cst_23 = arith.constant dense<0.000000e+00> : vector<6xf32>
    %45 = vector.multi_reduction <add>, %44, %cst_23 [1] : vector<6x6xf32> to vector<6xf32>
    %46 = vector.shape_cast %45 : vector<6xf32> to vector<6x1xf32>
    %47 = vector.broadcast %46 : vector<6x1xf32> to vector<6x6xf32>
    %48 = arith.divf %44, %47 : vector<6x6xf32>
    %cst_24 = arith.constant dense<0.000000e+00> : vector<6x8xf32>
    %49 = tpu.matmul %48, %37, %cst_24 {dimension_numbers = #tpu.dot_dimension_numbers<[1], [0], [0], [1], [0, 0, 1, 1], [], []>} : vector<6x6xf32>, vector<6x8xf32>, vector<6x8xf32> -> vector<6x8xf32>
    %50 = vector.extract_strided_slice %32 {offsets = [0, 0], sizes = [8, 32], strides = [1, 1]} : vector<32x32xf32> to vector<8x32xf32>
    %cst_25 = arith.constant dense<0.000000e+00> : vector<6x32xf32>
    %51 = tpu.matmul %49, %50, %cst_25 {dimension_numbers = #tpu.dot_dimension_numbers<[1], [0], [0], [1], [0, 0, 1, 1], [], []>} : vector<6x8xf32>, vector<8x32xf32>, vector<6x32xf32> -> vector<6x32xf32>
    %52 = arith.addf %34, %51 : vector<6x32xf32>
    %53 = vector.extract_strided_slice %31 {offsets = [0, 8], sizes = [6, 8], strides = [1, 1]} : vector<6x96xf32> to vector<6x8xf32>
    %54 = vector.extract_strided_slice %31 {offsets = [0, 40], sizes = [6, 8], strides = [1, 1]} : vector<6x96xf32> to vector<6x8xf32>
    %55 = vector.extract_strided_slice %31 {offsets = [0, 72], sizes = [6, 8], strides = [1, 1]} : vector<6x96xf32> to vector<6x8xf32>
    %cst_26 = arith.constant dense<0.000000e+00> : vector<6x6xf32>
    %56 = tpu.matmul %53, %54, %cst_26 {dimension_numbers = #tpu.dot_dimension_numbers<[1], [1], [0], [0], [0, 0, 1, 0], [], []>} : vector<6x8xf32>, vector<6x8xf32>, vector<6x6xf32> -> vector<6x6xf32>
    %57 = arith.addf %56, %33 : vector<6x6xf32>
    %cst_27 = arith.constant dense<0xFF800000> : vector<6xf32>
    %58 = vector.multi_reduction <maximumf>, %57, %cst_27 [1] : vector<6x6xf32> to vector<6xf32>
    %59 = vector.shape_cast %58 : vector<6xf32> to vector<6x1xf32>
    %60 = vector.broadcast %59 : vector<6x1xf32> to vector<6x6xf32>
    %61 = arith.subf %57, %60 : vector<6x6xf32>
    %62 = math.exp %61 : vector<6x6xf32>
    %cst_28 = arith.constant dense<0.000000e+00> : vector<6xf32>
    %63 = vector.multi_reduction <add>, %62, %cst_28 [1] : vector<6x6xf32> to vector<6xf32>
    %64 = vector.shape_cast %63 : vector<6xf32> to vector<6x1xf32>
    %65 = vector.broadcast %64 : vector<6x1xf32> to vector<6x6xf32>
    %66 = arith.divf %62, %65 : vector<6x6xf32>
    %cst_29 = arith.constant dense<0.000000e+00> : vector<6x8xf32>
    %67 = tpu.matmul %66, %55, %cst_29 {dimension_numbers = #tpu.dot_dimension_numbers<[1], [0], [0], [1], [0, 0, 1, 1], [], []>} : vector<6x6xf32>, vector<6x8xf32>, vector<6x8xf32> -> vector<6x8xf32>
    %68 = vector.extract_strided_slice %32 {offsets = [8, 0], sizes = [8, 32], strides = [1, 1]} : vector<32x32xf32> to vector<8x32xf32>
    %cst_30 = arith.constant dense<0.000000e+00> : vector<6x32xf32>
    %69 = tpu.matmul %67, %68, %cst_30 {dimension_numbers = #tpu.dot_dimension_numbers<[1], [0], [0], [1], [0, 0, 1, 1], [], []>} : vector<6x8xf32>, vector<8x32xf32>, vector<6x32xf32> -> vector<6x32xf32>
    %70 = arith.addf %52, %69 : vector<6x32xf32>
    %71 = vector.extract_strided_slice %31 {offsets = [0, 16], sizes = [6, 8], strides = [1, 1]} : vector<6x96xf32> to vector<6x8xf32>
    %72 = vector.extract_strided_slice %31 {offsets = [0, 48], sizes = [6, 8], strides = [1, 1]} : vector<6x96xf32> to vector<6x8xf32>
    %73 = vector.extract_strided_slice %31 {offsets = [0, 80], sizes = [6, 8], strides = [1, 1]} : vector<6x96xf32> to vector<6x8xf32>
    %cst_31 = arith.constant dense<0.000000e+00> : vector<6x6xf32>
    %74 = tpu.matmul %71, %72, %cst_31 {dimension_numbers = #tpu.dot_dimension_numbers<[1], [1], [0], [0], [0, 0, 1, 0], [], []>} : vector<6x8xf32>, vector<6x8xf32>, vector<6x6xf32> -> vector<6x6xf32>
    %75 = arith.addf %74, %33 : vector<6x6xf32>
    %cst_32 = arith.constant dense<0xFF800000> : vector<6xf32>
    %76 = vector.multi_reduction <maximumf>, %75, %cst_32 [1] : vector<6x6xf32> to vector<6xf32>
    %77 = vector.shape_cast %76 : vector<6xf32> to vector<6x1xf32>
    %78 = vector.broadcast %77 : vector<6x1xf32> to vector<6x6xf32>
    %79 = arith.subf %75, %78 : vector<6x6xf32>
    %80 = math.exp %79 : vector<6x6xf32>
    %cst_33 = arith.constant dense<0.000000e+00> : vector<6xf32>
    %81 = vector.multi_reduction <add>, %80, %cst_33 [1] : vector<6x6xf32> to vector<6xf32>
    %82 = vector.shape_cast %81 : vector<6xf32> to vector<6x1xf32>
    %83 = vector.broadcast %82 : vector<6x1xf32> to vector<6x6xf32>
    %84 = arith.divf %80, %83 : vector<6x6xf32>
    %cst_34 = arith.constant dense<0.000000e+00> : vector<6x8xf32>
    %85 = tpu.matmul %84, %73, %cst_34 {dimension_numbers = #tpu.dot_dimension_numbers<[1], [0], [0], [1], [0, 0, 1, 1], [], []>} : vector<6x6xf32>, vector<6x8xf32>, vector<6x8xf32> -> vector<6x8xf32>
    %86 = vector.extract_strided_slice %32 {offsets = [16, 0], sizes = [8, 32], strides = [1, 1]} : vector<32x32xf32> to vector<8x32xf32>
    %cst_35 = arith.constant dense<0.000000e+00> : vector<6x32xf32>
    %87 = tpu.matmul %85, %86, %cst_35 {dimension_numbers = #tpu.dot_dimension_numbers<[1], [0], [0], [1], [0, 0, 1, 1], [], []>} : vector<6x8xf32>, vector<8x32xf32>, vector<6x32xf32> -> vector<6x32xf32>
    %88 = arith.addf %70, %87 : vector<6x32xf32>
    %89 = vector.extract_strided_slice %31 {offsets = [0, 24], sizes = [6, 8], strides = [1, 1]} : vector<6x96xf32> to vector<6x8xf32>
    %90 = vector.extract_strided_slice %31 {offsets = [0, 56], sizes = [6, 8], strides = [1, 1]} : vector<6x96xf32> to vector<6x8xf32>
    %91 = vector.extract_strided_slice %31 {offsets = [0, 88], sizes = [6, 8], strides = [1, 1]} : vector<6x96xf32> to vector<6x8xf32>
    %cst_36 = arith.constant dense<0.000000e+00> : vector<6x6xf32>
    %92 = tpu.matmul %89, %90, %cst_36 {dimension_numbers = #tpu.dot_dimension_numbers<[1], [1], [0], [0], [0, 0, 1, 0], [], []>} : vector<6x8xf32>, vector<6x8xf32>, vector<6x6xf32> -> vector<6x6xf32>
    %93 = arith.addf %92, %33 : vector<6x6xf32>
    %cst_37 = arith.constant dense<0xFF800000> : vector<6xf32>
    %94 = vector.multi_reduction <maximumf>, %93, %cst_37 [1] : vector<6x6xf32> to vector<6xf32>
    %95 = vector.shape_cast %94 : vector<6xf32> to vector<6x1xf32>
    %96 = vector.broadcast %95 : vector<6x1xf32> to vector<6x6xf32>
    %97 = arith.subf %93, %96 : vector<6x6xf32>
    %98 = math.exp %97 : vector<6x6xf32>
    %cst_38 = arith.constant dense<0.000000e+00> : vector<6xf32>
    %99 = vector.multi_reduction <add>, %98, %cst_38 [1] : vector<6x6xf32> to vector<6xf32>
    %100 = vector.shape_cast %99 : vector<6xf32> to vector<6x1xf32>
    %101 = vector.broadcast %100 : vector<6x1xf32> to vector<6x6xf32>
    %102 = arith.divf %98, %101 : vector<6x6xf32>
    %cst_39 = arith.constant dense<0.000000e+00> : vector<6x8xf32>
    %103 = tpu.matmul %102, %91, %cst_39 {dimension_numbers = #tpu.dot_dimension_numbers<[1], [0], [0], [1], [0, 0, 1, 1], [], []>} : vector<6x6xf32>, vector<6x8xf32>, vector<6x8xf32> -> vector<6x8xf32>
    %104 = vector.extract_strided_slice %32 {offsets = [24, 0], sizes = [8, 32], strides = [1, 1]} : vector<32x32xf32> to vector<8x32xf32>
    %cst_40 = arith.constant dense<0.000000e+00> : vector<6x32xf32>
    %105 = tpu.matmul %103, %104, %cst_40 {dimension_numbers = #tpu.dot_dimension_numbers<[1], [0], [0], [1], [0, 0, 1, 1], [], []>} : vector<6x8xf32>, vector<8x32xf32>, vector<6x32xf32> -> vector<6x32xf32>
    %106 = arith.addf %88, %105 : vector<6x32xf32>
    %c0_41 = arith.constant 0 : index
    %c224 = arith.constant 224 : index
    %107 = vector.load %arg3[%c0_41, %c224] : memref<32x228xf32, #tpu.memory_space<vmem>>, vector<32x4xf32>
    %108 = arith.addf %22, %106 : vector<6x32xf32>
    %cst_42 = arith.constant dense<0.000000e+00> : vector<6x4xf32>
    %109 = tpu.matmul %108, %107, %cst_42 {dimension_numbers = #tpu.dot_dimension_numbers<[1], [0], [0], [1], [0, 0, 1, 1], [], []>} : vector<6x32xf32>, vector<32x4xf32>, vector<6x4xf32> -> vector<6x4xf32>
    %c3 = arith.constant 3 : index
    %c0_43 = arith.constant 0 : index
    %110 = vector.load %arg4[%c3, %c0_43] : memref<4x96xf32, #tpu.memory_space<vmem>>, vector<1x4xf32>
    %111 = vector.broadcast %110 : vector<1x4xf32> to vector<6x4xf32>
    %112 = arith.addf %109, %111 : vector<6x4xf32>
    %113 = vector.extract_strided_slice %112 {offsets = [0, 0], sizes = [3, 4], strides = [1, 1]} : vector<6x4xf32> to vector<3x4xf32>
    %c0_44 = arith.constant 0 : index
    %c0_45 = arith.constant 0 : index
    %c0_46 = arith.constant 0 : index
    %114 = vector.load %arg6[%c0_44, %c0_45, %c0_46] : memref<2x3x4xf32, #tpu.memory_space<vmem>>, vector<1x3x4xf32>
    %115 = vector.shape_cast %114 : vector<1x3x4xf32> to vector<3x4xf32>
    %116 = vector.shape_cast %113 : vector<3x4xf32> to vector<1x3x4xf32>
    tpu.vector_store %arg6[%c0_44, %c0_45, %c0_46], %116 {strides = array<i32>} : memref<2x3x4xf32, #tpu.memory_space<vmem>>, vector<1x3x4xf32>,
    %117 = vector.extract_strided_slice %112 {offsets = [3, 0], sizes = [3, 4], strides = [1, 1]} : vector<6x4xf32> to vector<3x4xf32>
    %c1_47 = arith.constant 1 : index
    %c0_48 = arith.constant 0 : index
    %c0_49 = arith.constant 0 : index
    %118 = vector.load %arg6[%c1_47, %c0_48, %c0_49] : memref<2x3x4xf32, #tpu.memory_space<vmem>>, vector<1x3x4xf32>
    %119 = vector.shape_cast %118 : vector<1x3x4xf32> to vector<3x4xf32>
    %120 = vector.shape_cast %117 : vector<3x4xf32> to vector<1x3x4xf32>
    tpu.vector_store %arg6[%c1_47, %c0_48, %c0_49], %120 {strides = array<i32>} : memref<2x3x4xf32, #tpu.memory_space<vmem>>, vector<1x3x4xf32>,
    return
  }
}

</mosaic_0001>

<llo_original>
// kernel: multi_example_rule_inference_net.1
$region0: #{multi_example_rule_inference_net.1}
  #allocation0 [shape = 'u32[]', space=smem, size = 0x4, offset = 0x4, fixed_abs, tag = 'smem constant byte address 0x4 - core index']
  #allocation1 [shape = 'u32[144,128]{1,0:T(1,128)}', space=vmem, size = 0x12000, scoped, tag = 'internal scratch']
  %s0 = inlined_call_operand.vmem [shape: f32[12,16], index: 0, kind: input, shape index: {}]
  %s1 = inlined_call_operand.vmem [shape: f32[16,256], index: 1, kind: input, shape index: {}]
  %s2 = inlined_call_operand.vmem [shape: f32[64,32], index: 2, kind: input, shape index: {}]
  %s3 = inlined_call_operand.vmem [shape: f32[32,228], index: 3, kind: input, shape index: {}]
  %s4 = inlined_call_operand.vmem [shape: f32[4,96], index: 4, kind: input, shape index: {}]
  %s5 = inlined_call_operand.vmem [shape: f32[6,6], index: 5, kind: input, shape index: {}]
  %s6 = inlined_call_operand.vmem [shape: f32[2,3,4], index: 6, kind: output, shape index: {}]
  %s7 = sld [smem:[#allocation0]]
  $region34: #{multi_example_rule_inference_net.1} parent=0
    _
  %s9 = ssub.s32 1, %s7
  %s10 = scalar_select 0, %s9, %s7
  // Predicated region
  $region2: #{multi_example_rule_inference_net.1} parent=0 // pred_check
    _
  $region3: #{multi_example_rule_inference_net.1} parent=0 // pred_check_branch
    %12 = sbr.rel (0) target = $region5
  $region4: #{multi_example_rule_inference_net.1} parent=0 // pred_region
    _
  $region5: #{multi_example_rule_inference_net.1} parent=0 // pred_fallthru
    _
  // Predicated region
  $region6: #{multi_example_rule_inference_net.1} parent=0 // pred_check
    _
  $region7: #{multi_example_rule_inference_net.1} parent=0 // pred_check_branch
    %14 = sbr.rel (0) target = $region9
  $region8: #{multi_example_rule_inference_net.1} parent=0 // pred_region
    _
  $region9: #{multi_example_rule_inference_net.1} parent=0 // pred_fallthru
    _
  // Predicated region
  $region10: #{multi_example_rule_inference_net.1} parent=0 // pred_check
    _
  $region11: #{multi_example_rule_inference_net.1} parent=0 // pred_check_branch
    %16 = sbr.rel (0) target = $region13
  $region12: #{multi_example_rule_inference_net.1} parent=0 // pred_region
    _
  $region13: #{multi_example_rule_inference_net.1} parent=0 // pred_fallthru
    _
  // Predicated region
  $region14: #{multi_example_rule_inference_net.1} parent=0 // pred_check
    _
  $region15: #{multi_example_rule_inference_net.1} parent=0 // pred_check_branch
    %18 = sbr.rel (0) target = $region17
  $region16: #{multi_example_rule_inference_net.1} parent=0 // pred_region
    _
  $region17: #{multi_example_rule_inference_net.1} parent=0 // pred_fallthru
    _
  // Predicated region
  $region18: #{multi_example_rule_inference_net.1} parent=0 // pred_check
    _
  $region19: #{multi_example_rule_inference_net.1} parent=0 // pred_check_branch
    %20 = sbr.rel (0) target = $region21
  $region20: #{multi_example_rule_inference_net.1} parent=0 // pred_region
    _
  $region21: #{multi_example_rule_inference_net.1} parent=0 // pred_fallthru
    _
  // Predicated region
  $region22: #{multi_example_rule_inference_net.1} parent=0 // pred_check
    _
  $region23: #{multi_example_rule_inference_net.1} parent=0 // pred_check_branch
    %22 = sbr.rel (0) target = $region25
  $region24: #{multi_example_rule_inference_net.1} parent=0 // pred_region
    _
  $region25: #{multi_example_rule_inference_net.1} parent=0 // pred_fallthru
    _
  %v23 = vld [vmem:[%s0] sm:$0xff]
  %v24 = vld [vmem:[%s0 + $0x8] sm:$0xf]
  %v25 = vld [vmem:[%s1] sm:$0xff]
  %v26 = vld [vmem:[%s1 + $0x8] sm:$0xff]
  %v27 = vld [vmem:[%s1 + $0x10] sm:$0xff]
  %v28 = vld [vmem:[%s1 + $0x18] sm:$0xff]
  %vm29 = vcmask 130048
  %v31 = vsel %vm29, %v23, 0
  %v34 = vsel %vm29, %v24, 0
  %36 = vmatprep.subr.mxu0 %v26
  %37 = vmatpush1.msra.mxu0 %v25
  %38 = vmatprep.subr.mxu0 %v28
  %39 = vmatpush1.msra.mxu0 %v27
  %40 = vmatprep.subr.mxu0 0.0
  %41 = vmatpush1.msra.mxu0 0.0
  %42 = vmatprep.subr.mxu0 0.0
  %43 = vmatpush1.msra.mxu0 0.0
  %44 = vmatprep.subr.mxu0 0.0
  %45 = vmatpush1.msra.mxu0 0.0
  %46 = vmatprep.subr.mxu0 0.0
  %47 = vmatpush1.msra.mxu0 0.0
  %48 = vmatprep.subr.mxu0 0.0
  %49 = vmatpush1.msra.mxu0 0.0
  %50 = vmatprep.subr.mxu0 0.0
  %51 = vmatpush1.msra.mxu0 0.0
  %52 = vmatprep.subr.mxu0 0.0
  %53 = vmatpush1.msra.mxu0 0.0
  %54 = vmatprep.subr.mxu0 0.0
  %55 = vmatpush1.msra.mxu0 0.0
  %56 = vmatprep.subr.mxu0 0.0
  %57 = vmatpush1.msra.mxu0 0.0
  %58 = vmatprep.subr.mxu0 0.0
  %59 = vmatpush1.msra.mxu0 0.0
  %60 = vmatprep.subr.mxu0 0.0
  %61 = vmatpush1.msra.mxu0 0.0
  %62 = vmatprep.subr.mxu0 0.0
  %63 = vmatpush1.msra.mxu0 0.0
  %64 = vmatprep.subr.mxu0 0.0
  %65 = vmatpush1.msra.mxu0 0.0
  %66 = vmatprep.subr.mxu0 0.0
  %67 = vmatpush1.msra.mxu0 0.0
  %68 = vmatprep.subr.mxu0 0.0
  %69 = vmatpush1.msra.mxu0 0.0
  %70 = vmatprep.subr.mxu0 0.0
  %71 = vmatpush1.msra.mxu0 0.0
  %72 = vmatprep.subr.mxu0 0.0
  %73 = vmatpush1.msra.mxu0 0.0
  %74 = vmatprep.subr.mxu0 0.0
  %75 = vmatpush1.msra.mxu0 0.0
  %76 = vmatprep.subr.mxu0 0.0
  %77 = vmatpush1.msra.mxu0 0.0
  %78 = vmatprep.subr.mxu0 0.0
  %79 = vmatpush1.msra.mxu0 0.0
  %80 = vmatprep.subr.mxu0 0.0
  %81 = vmatpush1.msra.mxu0 0.0
  %82 = vmatprep.subr.mxu0 0.0
  %83 = vmatpush1.msra.mxu0 0.0
  %84 = vmatprep.subr.mxu0 0.0
  %85 = vmatpush1.msra.mxu0 0.0
  %86 = vmatprep.subr.mxu0 0.0
  %87 = vmatpush1.msra.mxu0 0.0
  %88 = vmatprep.subr.mxu0 0.0
  %89 = vmatpush1.msra.mxu0 0.0
  %90 = vmatprep.subr.mxu0 0.0
  %91 = vmatpush1.msra.mxu0 0.0
  %92 = vmatprep.subr.mxu0 0.0
  %93 = vmatpush1.msra.mxu0 0.0
  %94 = vmatprep.subr.mxu0 0.0
  %95 = vmatpush1.msra.mxu0 0.0
  %96 = vmatprep.subr.mxu0 0.0
  %97 = vmatpush1.msra.mxu0 0.0
  %98 = vmatprep.subr.mxu0 0.0
  %99 = vmatpush1.msra.mxu0 0.0
  %100 = vmatprep.mubr.f32.mxu0 0.0
  %101 = vmatmul.mubr.f32.gmra.mrb[0].mxu0 %v31
  %v102 = vpop.f32.mrb[0].mxu0
  %v103 = vadd.f32 0.0, %v102
  %v104 = vpop.f32.mrb[0].mxu0
  %v105 = vadd.f32 0.0, %v104
  %106 = vmatprep.mubr.f32.mxu0 0.0
  %107 = vmatmul.mubr.f32.gmra.mrb[0].mxu0 %v34
  %v108 = vpop.f32.mrb[0].mxu0
  %v109 = vadd.f32 0.0, %v108
  %v110 = vpop.f32.mrb[0].mxu0
  %v111 = vadd.f32 0.0, %v110
  %112 = vdwg.mxu0
  %115 = vrot.lane.b32.xlu0 %v103, 64
  %v116 = vpop.permute.xlu0 %115
  %117 = vrot.lane.b32.xlu0 %v109, 64
  %v118 = vpop.permute.xlu0 %117
  %v121 = vmax.f32 %v103, %v116
  %v122 = vmax.f32 %v109, %v118
  %125 = vrot.lane.b32.xlu0 %v105, 64
  %v126 = vpop.permute.xlu0 %125
  %127 = vrot.lane.b32.xlu0 %v111, 64
  %v128 = vpop.permute.xlu0 %127
  %v131 = vmax.f32 %v105, %v126
  %v132 = vmax.f32 %v111, %v128
  %v133 = vmax.f32 %v121, %v131
  %v134 = vmax.f32 %v122, %v132
  %v135 = vld [vmem:[%s4] sm:$0x1]
  %v136 = vlaneseq
  %v137 = vshrl.u32 %v136, 7
  %v138 = vsub.s32 0, %v137
  %v139 = vrot.slane %v135, %v138
  %v140 = vadd.f32 %v133, %v139
  %v141 = vadd.f32 %v134, %v139
  %v142 = vmax.f32 %v140, 0.0
  %v143 = vmax.f32 %v141, 0.0
  %v144 = vld [vmem:[%s2] sm:$0xff]
  %v145 = vld [vmem:[%s2 + $0x8] sm:$0xff]
  %v146 = vld [vmem:[%s2 + $0x10] sm:$0xff]
  %v147 = vld [vmem:[%s2 + $0x18] sm:$0xff]
  %v148 = vld [vmem:[%s2 + $0x20] sm:$0xff]
  %v149 = vld [vmem:[%s2 + $0x28] sm:$0xff]
  %v150 = vld [vmem:[%s2 + $0x30] sm:$0xff]
  %v151 = vld [vmem:[%s2 + $0x38] sm:$0xff]
  %v152 = vld [vmem:[%s4 + $0x1] sm:$0x1]
  %v153 = vlaneseq
  %v154 = vshrl.u32 %v153, 7
  %v155 = vsub.s32 0, %v154
  %v156 = vrot.slane %v152, %v155
  %vm157 = vcmask 523264
  %v159 = vsel %vm157, %v142, 0
  %v162 = vsel %vm157, %v143, 0
  %164 = vmatprep.subr.mxu0 0.0
  %165 = vmatpush1.msra.mxu0 %v144
  %166 = vmatprep.subr.mxu0 0.0
  %167 = vmatpush1.msra.mxu0 %v145
  %168 = vmatprep.subr.mxu0 0.0
  %169 = vmatpush1.msra.mxu0 %v146
  %170 = vmatprep.subr.mxu0 0.0
  %171 = vmatpush1.msra.mxu0 %v147
  %172 = vmatprep.subr.mxu0 0.0
  %173 = vmatpush1.msra.mxu0 %v148
  %174 = vmatprep.subr.mxu0 0.0
  %175 = vmatpush1.msra.mxu0 %v149
  %176 = vmatprep.subr.mxu0 0.0
  %177 = vmatpush1.msra.mxu0 %v150
  %178 = vmatprep.subr.mxu0 0.0
  %179 = vmatpush1.msra.mxu0 %v151
  %180 = vmatprep.subr.mxu0 0.0
  %181 = vmatpush1.msra.mxu0 0.0
  %182 = vmatprep.subr.mxu0 0.0
  %183 = vmatpush1.msra.mxu0 0.0
  %184 = vmatprep.subr.mxu0 0.0
  %185 = vmatpush1.msra.mxu0 0.0
  %186 = vmatprep.subr.mxu0 0.0
  %187 = vmatpush1.msra.mxu0 0.0
  %188 = vmatprep.subr.mxu0 0.0
  %189 = vmatpush1.msra.mxu0 0.0
  %190 = vmatprep.subr.mxu0 0.0
  %191 = vmatpush1.msra.mxu0 0.0
  %192 = vmatprep.subr.mxu0 0.0
  %193 = vmatpush1.msra.mxu0 0.0
  %194 = vmatprep.subr.mxu0 0.0
  %195 = vmatpush1.msra.mxu0 0.0
  %196 = vmatprep.subr.mxu0 0.0
  %197 = vmatpush1.msra.mxu0 0.0
  %198 = vmatprep.subr.mxu0 0.0
  %199 = vmatpush1.msra.mxu0 0.0
  %200 = vmatprep.subr.mxu0 0.0
  %201 = vmatpush1.msra.mxu0 0.0
  %202 = vmatprep.subr.mxu0 0.0
  %203 = vmatpush1.msra.mxu0 0.0
  %204 = vmatprep.subr.mxu0 0.0
  %205 = vmatpush1.msra.mxu0 0.0
  %206 = vmatprep.subr.mxu0 0.0
  %207 = vmatpush1.msra.mxu0 0.0
  %208 = vmatprep.subr.mxu0 0.0
  %209 = vmatpush1.msra.mxu0 0.0
  %210 = vmatprep.subr.mxu0 0.0
  %211 = vmatpush1.msra.mxu0 0.0
  %212 = vmatprep.subr.mxu0 0.0
  %213 = vmatpush1.msra.mxu0 0.0
  %214 = vmatprep.subr.mxu0 0.0
  %215 = vmatpush1.msra.mxu0 0.0
  %216 = vmatprep.subr.mxu0 0.0
  %217 = vmatpush1.msra.mxu0 0.0
  %218 = vmatprep.subr.mxu0 0.0
  %219 = vmatpush1.msra.mxu0 0.0
  %220 = vmatprep.subr.mxu0 0.0
  %221 = vmatpush1.msra.mxu0 0.0
  %222 = vmatprep.subr.mxu0 0.0
  %223 = vmatpush1.msra.mxu0 0.0
  %224 = vmatprep.subr.mxu0 0.0
  %225 = vmatpush1.msra.mxu0 0.0
  %226 = vmatprep.subr.mxu0 0.0
  %227 = vmatpush1.msra.mxu0 0.0
  %228 = vmatprep.mubr.f32.mxu0 0.0
  %229 = vmatmul.mubr.f32.gmra.mrb[0].mxu0 %v159
  %v230 = vpop.f32.mrb[0].mxu0
  %v231 = vadd.f32 %v156, %v230
  %v232 = vpop.f32.mrb[0].mxu0
  %233 = vmatprep.mubr.f32.mxu0 0.0
  %234 = vmatmul.mubr.f32.gmra.mrb[0].mxu0 %v162
  %v235 = vpop.f32.mrb[0].mxu0
  %v236 = vadd.f32 %v156, %v235
  %v237 = vpop.f32.mrb[0].mxu0
  %238 = vdwg.mxu0
  %v239 = vmax.f32 %v231, 0.0
  %v240 = vmax.f32 %v236, 0.0
  %v241 = vld [vmem:[%s3] sm:$0xff]
  %v242 = vld [vmem:[%s3 + $0x10] sm:$0xff]
  %v243 = vld [vmem:[%s3 + $0x20] sm:$0xff]
  %v244 = vld [vmem:[%s3 + $0x30] sm:$0xff]
  %v245 = vld [vmem:[%s3 + $0x8] sm:$0xff]
  %v246 = vld [vmem:[%s3 + $0x18] sm:$0xff]
  %v247 = vld [vmem:[%s3 + $0x28] sm:$0xff]
  %v248 = vld [vmem:[%s3 + $0x38] sm:$0xff]
  %vm251 = vcmask 1041408
  %v252 = vrot.slane %v239, 6
  %v253 = vrot.slane %v240, 6
  %v254 = vsel %vm251, %v252, %v253
  %263 = vrot.lane.b32.xlu0 %v241, 32
  %v264 = vpop.permute.xlu0 %263
  %265 = vrot.lane.b32.xlu0 %v245, 32
  %v266 = vpop.permute.xlu0 %265
  %267 = vrot.lane.b32.xlu0 %v242, 32
  %v268 = vpop.permute.xlu0 %267
  %269 = vrot.lane.b32.xlu0 %v246, 32
  %v270 = vpop.permute.xlu0 %269
  %271 = vrot.lane.b32.xlu0 %v243, 32
  %v272 = vpop.permute.xlu0 %271
  %273 = vrot.lane.b32.xlu0 %v247, 32
  %v274 = vpop.permute.xlu0 %273
  %275 = vrot.lane.b32.xlu0 %v244, 32
  %v276 = vpop.permute.xlu0 %275
  %277 = vrot.lane.b32.xlu0 %v248, 32
  %v278 = vpop.permute.xlu0 %277
  %vm279 = vcmask 261120
  %v280 = vsel %vm279, %v264, %v266
  %v281 = vsel %vm279, %v268, %v270
  %v282 = vsel %vm279, %v272, %v274
  %v283 = vsel %vm279, %v276, %v278
  %v288 = vsel %vm279, %v254, 0
  %290 = vmatprep.subr.mxu0 0.0
  %291 = vmatpush1.msra.mxu0 %v280
  %292 = vmatprep.subr.mxu0 0.0
  %293 = vmatpush1.msra.mxu0 %v281
  %294 = vmatprep.subr.mxu0 0.0
  %295 = vmatpush1.msra.mxu0 %v282
  %296 = vmatprep.subr.mxu0 0.0
  %297 = vmatpush1.msra.mxu0 %v283
  %298 = vmatprep.subr.mxu0 0.0
  %299 = vmatpush1.msra.mxu0 0.0
  %300 = vmatprep.subr.mxu0 0.0
  %301 = vmatpush1.msra.mxu0 0.0
  %302 = vmatprep.subr.mxu0 0.0
  %303 = vmatpush1.msra.mxu0 0.0
  %304 = vmatprep.subr.mxu0 0.0
  %305 = vmatpush1.msra.mxu0 0.0
  %306 = vmatprep.subr.mxu0 0.0
  %307 = vmatpush1.msra.mxu0 0.0
  %308 = vmatprep.subr.mxu0 0.0
  %309 = vmatpush1.msra.mxu0 0.0
  %310 = vmatprep.subr.mxu0 0.0
  %311 = vmatpush1.msra.mxu0 0.0
  %312 = vmatprep.subr.mxu0 0.0
  %313 = vmatpush1.msra.mxu0 0.0
  %314 = vmatprep.subr.mxu0 0.0
  %315 = vmatpush1.msra.mxu0 0.0
  %316 = vmatprep.subr.mxu0 0.0
  %317 = vmatpush1.msra.mxu0 0.0
  %318 = vmatprep.subr.mxu0 0.0
  %319 = vmatpush1.msra.mxu0 0.0
  %320 = vmatprep.subr.mxu0 0.0
  %321 = vmatpush1.msra.mxu0 0.0
  %322 = vmatprep.subr.mxu0 0.0
  %323 = vmatpush1.msra.mxu0 0.0
  %324 = vmatprep.subr.mxu0 0.0
  %325 = vmatpush1.msra.mxu0 0.0
  %326 = vmatprep.subr.mxu0 0.0
  %327 = vmatpush1.msra.mxu0 0.0
  %328 = vmatprep.subr.mxu0 0.0
  %329 = vmatpush1.msra.mxu0 0.0
  %330 = vmatprep.subr.mxu0 0.0
  %331 = vmatpush1.msra.mxu0 0.0
  %332 = vmatprep.subr.mxu0 0.0
  %333 = vmatpush1.msra.mxu0 0.0
  %334 = vmatprep.subr.mxu0 0.0
  %335 = vmatpush1.msra.mxu0 0.0
  %336 = vmatprep.subr.mxu0 0.0
  %337 = vmatpush1.msra.mxu0 0.0
  %338 = vmatprep.subr.mxu0 0.0
  %339 = vmatpush1.msra.mxu0 0.0
  %340 = vmatprep.subr.mxu0 0.0
  %341 = vmatpush1.msra.mxu0 0.0
  %342 = vmatprep.subr.mxu0 0.0
  %343 = vmatpush1.msra.mxu0 0.0
  %344 = vmatprep.subr.mxu0 0.0
  %345 = vmatpush1.msra.mxu0 0.0
  %346 = vmatprep.subr.mxu0 0.0
  %347 = vmatpush1.msra.mxu0 0.0
  %348 = vmatprep.subr.mxu0 0.0
  %349 = vmatpush1.msra.mxu0 0.0
  %350 = vmatprep.subr.mxu0 0.0
  %351 = vmatpush1.msra.mxu0 0.0
  %352 = vmatprep.subr.mxu0 0.0
  %353 = vmatpush1.msra.mxu0 0.0
  %354 = vmatprep.mubr.f32.mxu0 0.0
  %355 = vmatmul.mubr.f32.gmra.mrb[0].mxu0 %v288
  %v356 = vpop.f32.mrb[0].mxu0
  %v357 = vadd.f32 0.0, %v356
  %v358 = vpop.f32.mrb[0].mxu0
  %359 = vdwg.mxu0
  %v360 = vsel %vm279, %v239, 0
  %362 = vmatprep.subr.mxu0 0.0
  %363 = vmatpush1.msra.mxu0 %v241
  %364 = vmatprep.subr.mxu0 0.0
  %365 = vmatpush1.msra.mxu0 %v242
  %366 = vmatprep.subr.mxu0 0.0
  %367 = vmatpush1.msra.mxu0 %v243
  %368 = vmatprep.subr.mxu0 0.0
  %369 = vmatpush1.msra.mxu0 %v244
  %370 = vmatprep.subr.mxu0 0.0
  %371 = vmatpush1.msra.mxu0 0.0
  %372 = vmatprep.subr.mxu0 0.0
  %373 = vmatpush1.msra.mxu0 0.0
  %374 = vmatprep.subr.mxu0 0.0
  %375 = vmatpush1.msra.mxu0 0.0
  %376 = vmatprep.subr.mxu0 0.0
  %377 = vmatpush1.msra.mxu0 0.0
  %378 = vmatprep.subr.mxu0 0.0
  %379 = vmatpush1.msra.mxu0 0.0
  %380 = vmatprep.subr.mxu0 0.0
  %381 = vmatpush1.msra.mxu0 0.0
  %382 = vmatprep.subr.mxu0 0.0
  %383 = vmatpush1.msra.mxu0 0.0
  %384 = vmatprep.subr.mxu0 0.0
  %385 = vmatpush1.msra.mxu0 0.0
  %386 = vmatprep.subr.mxu0 0.0
  %387 = vmatpush1.msra.mxu0 0.0
  %388 = vmatprep.subr.mxu0 0.0
  %389 = vmatpush1.msra.mxu0 0.0
  %390 = vmatprep.subr.mxu0 0.0
  %391 = vmatpush1.msra.mxu0 0.0
  %392 = vmatprep.subr.mxu0 0.0
  %393 = vmatpush1.msra.mxu0 0.0
  %394 = vmatprep.subr.mxu0 0.0
  %395 = vmatpush1.msra.mxu0 0.0
  %396 = vmatprep.subr.mxu0 0.0
  %397 = vmatpush1.msra.mxu0 0.0
  %398 = vmatprep.subr.mxu0 0.0
  %399 = vmatpush1.msra.mxu0 0.0
  %400 = vmatprep.subr.mxu0 0.0
  %401 = vmatpush1.msra.mxu0 0.0
  %402 = vmatprep.subr.mxu0 0.0
  %403 = vmatpush1.msra.mxu0 0.0
  %404 = vmatprep.subr.mxu0 0.0
  %405 = vmatpush1.msra.mxu0 0.0
  %406 = vmatprep.subr.mxu0 0.0
  %407 = vmatpush1.msra.mxu0 0.0
  %408 = vmatprep.subr.mxu0 0.0
  %409 = vmatpush1.msra.mxu0 0.0
  %410 = vmatprep.subr.mxu0 0.0
  %411 = vmatpush1.msra.mxu0 0.0
  %412 = vmatprep.subr.mxu0 0.0
  %413 = vmatpush1.msra.mxu0 0.0
  %414 = vmatprep.subr.mxu0 0.0
  %415 = vmatpush1.msra.mxu0 0.0
  %416 = vmatprep.subr.mxu0 0.0
  %417 = vmatpush1.msra.mxu0 0.0
  %418 = vmatprep.subr.mxu0 0.0
  %419 = vmatpush1.msra.mxu0 0.0
  %420 = vmatprep.subr.mxu0 0.0
  %421 = vmatpush1.msra.mxu0 0.0
  %422 = vmatprep.subr.mxu0 0.0
  %423 = vmatpush1.msra.mxu0 0.0
  %424 = vmatprep.subr.mxu0 0.0
  %425 = vmatpush1.msra.mxu0 0.0
  %426 = vmatprep.mubr.f32.mxu0 0.0
  %427 = vmatmul.mubr.f32.gmra.mrb[0].mxu0 %v360
  %v428 = vpop.f32.mrb[0].mxu0
  %v429 = vadd.f32 %v357, %v428
  %v430 = vpop.f32.mrb[0].mxu0
  %431 = vdwg.mxu0
  %v432 = vld [vmem:[%s4 + $0x2] sm:$0x1]
  %v433 = vlaneseq
  %v434 = vshrl.u32 %v433, 7
  %v435 = vsub.s32 0, %v434
  %v436 = vrot.slane %v432, %v435
  %v437 = vadd.f32 %v429, %v436
  %v438 = vld [vmem:[%s5] sm:$0x3f]
  %440 = vrot.lane.b32.xlu0 %v437, 96
  %v441 = vpop.permute.xlu0 %440
  %vm442 = vcmask 64512
  %v443 = vsel %vm442, %v437, 0
  %v445 = vsel %vm442, %v441, 0
  %447 = vmatprep.subr.mxu0 0.0
  %448 = vmatpush1.xpose.msra.mxu0 %v445
  %449 = vmatprep.subr.mxu0 0.0
  %450 = vmatpush1.xpose.msra.mxu0 0.0
  %451 = vmatprep.subr.mxu0 0.0
  %452 = vmatpush1.xpose.msra.mxu0 0.0
  %453 = vmatprep.subr.mxu0 0.0
  %454 = vmatpush1.xpose.msra.mxu0 0.0
  %455 = vmatprep.subr.mxu0 0.0
  %456 = vmatpush1.xpose.msra.mxu0 0.0
  %457 = vmatprep.subr.mxu0 0.0
  %458 = vmatpush1.xpose.msra.mxu0 0.0
  %459 = vmatprep.subr.mxu0 0.0
  %460 = vmatpush1.xpose.msra.mxu0 0.0
  %461 = vmatprep.subr.mxu0 0.0
  %462 = vmatpush1.xpose.msra.mxu0 0.0
  %463 = vmatprep.subr.mxu0 0.0
  %464 = vmatpush1.xpose.msra.mxu0 0.0
  %465 = vmatprep.subr.mxu0 0.0
  %466 = vmatpush1.xpose.msra.mxu0 0.0
  %467 = vmatprep.subr.mxu0 0.0
  %468 = vmatpush1.xpose.msra.mxu0 0.0
  %469 = vmatprep.subr.mxu0 0.0
  %470 = vmatpush1.xpose.msra.mxu0 0.0
  %471 = vmatprep.subr.mxu0 0.0
  %472 = vmatpush1.xpose.msra.mxu0 0.0
  %473 = vmatprep.subr.mxu0 0.0
  %474 = vmatpush1.xpose.msra.mxu0 0.0
  %475 = vmatprep.subr.mxu0 0.0
  %476 = vmatpush1.xpose.msra.mxu0 0.0
  %477 = vmatprep.subr.mxu0 0.0
  %478 = vmatpush1.xpose.msra.mxu0 0.0
  %479 = vmatprep.subr.mxu0 0.0
  %480 = vmatpush1.xpose.msra.mxu0 0.0
  %481 = vmatprep.subr.mxu0 0.0
  %482 = vmatpush1.xpose.msra.mxu0 0.0
  %483 = vmatprep.subr.mxu0 0.0
  %484 = vmatpush1.xpose.msra.mxu0 0.0
  %485 = vmatprep.subr.mxu0 0.0
  %486 = vmatpush1.xpose.msra.mxu0 0.0
  %487 = vmatprep.subr.mxu0 0.0
  %488 = vmatpush1.xpose.msra.mxu0 0.0
  %489 = vmatprep.subr.mxu0 0.0
  %490 = vmatpush1.xpose.msra.mxu0 0.0
  %491 = vmatprep.subr.mxu0 0.0
  %492 = vmatpush1.xpose.msra.mxu0 0.0
  %493 = vmatprep.subr.mxu0 0.0
  %494 = vmatpush1.xpose.msra.mxu0 0.0
  %495 = vmatprep.subr.mxu0 0.0
  %496 = vmatpush1.xpose.msra.mxu0 0.0
  %497 = vmatprep.subr.mxu0 0.0
  %498 = vmatpush1.xpose.msra.mxu0 0.0
  %499 = vmatprep.subr.mxu0 0.0
  %500 = vmatpush1.xpose.msra.mxu0 0.0
  %501 = vmatprep.subr.mxu0 0.0
  %502 = vmatpush1.xpose.msra.mxu0 0.0
  %503 = vmatprep.subr.mxu0 0.0
  %504 = vmatpush1.xpose.msra.mxu0 0.0
  %505 = vmatprep.subr.mxu0 0.0
  %506 = vmatpush1.xpose.msra.mxu0 0.0
  %507 = vmatprep.subr.mxu0 0.0
  %508 = vmatpush1.xpose.msra.mxu0 0.0
  %509 = vmatprep.subr.mxu0 0.0
  %510 = vmatpush1.xpose.msra.mxu0 0.0
  %511 = vmatprep.mubr.f32.mxu0 0.0
  %512 = vmatmul.mubr.f32.gmra.mrb[0].mxu0 %v443
  %v513 = vpop.f32.mrb[0].mxu0
  %v514 = vadd.f32 %v438, %v513
  %v515 = vpop.f32.mrb[0].mxu0
  %516 = vdwg.mxu0
  %vm517 = vcmask 46080
  %v518 = vsel %vm517, %v514, -inf
  %519 = vmax.xlane.f32.xlu0 %v518
  %v520 = vpop.xlane.xlu0 %519
  %v521 = vsub.f32 %v514, %v520
  %v522 = vmul.f32 %v521, 1.442695
  %v523 = vpow.pop %v522
  %v524 = vsel %vm517, %v523, 0.0
  %525 = vadd.xlane.f32.xlu0 %v524
  %v526 = vpop.xlane.xlu0 %525
  %v527 = vrcp.pop %v526
  %v528 = vmul.f32 %v523, %v527
  %529 = vrot.lane.b32.xlu0 %v437, 64
  %v530 = vpop.permute.xlu0 %529
  %vm531 = vcmask 48128
  %v533 = vsel %vm531, %v528, 0
  %vm535 = vcmask 1045504
  %v536 = vsel %vm535, %v530, 0
  %538 = vmatprep.subr.mxu0 0.0
  %539 = vmatpush1.msra.mxu0 %v536
  %540 = vmatprep.subr.mxu0 0.0
  %541 = vmatpush1.msra.mxu0 0.0
  %542 = vmatprep.subr.mxu0 0.0
  %543 = vmatpush1.msra.mxu0 0.0
  %544 = vmatprep.subr.mxu0 0.0
  %545 = vmatpush1.msra.mxu0 0.0
  %546 = vmatprep.subr.mxu0 0.0
  %547 = vmatpush1.msra.mxu0 0.0
  %548 = vmatprep.subr.mxu0 0.0
  %549 = vmatpush1.msra.mxu0 0.0
  %550 = vmatprep.subr.mxu0 0.0
  %551 = vmatpush1.msra.mxu0 0.0
  %552 = vmatprep.subr.mxu0 0.0
  %553 = vmatpush1.msra.mxu0 0.0
  %554 = vmatprep.subr.mxu0 0.0
  %555 = vmatpush1.msra.mxu0 0.0
  %556 = vmatprep.subr.mxu0 0.0
  %557 = vmatpush1.msra.mxu0 0.0
  %558 = vmatprep.subr.mxu0 0.0
  %559 = vmatpush1.msra.mxu0 0.0
  %560 = vmatprep.subr.mxu0 0.0
  %561 = vmatpush1.msra.mxu0 0.0
  %562 = vmatprep.subr.mxu0 0.0
  %563 = vmatpush1.msra.mxu0 0.0
  %564 = vmatprep.subr.mxu0 0.0
  %565 = vmatpush1.msra.mxu0 0.0
  %566 = vmatprep.subr.mxu0 0.0
  %567 = vmatpush1.msra.mxu0 0.0
  %568 = vmatprep.subr.mxu0 0.0
  %569 = vmatpush1.msra.mxu0 0.0
  %570 = vmatprep.subr.mxu0 0.0
  %571 = vmatpush1.msra.mxu0 0.0
  %572 = vmatprep.subr.mxu0 0.0
  %573 = vmatpush1.msra.mxu0 0.0
  %574 = vmatprep.subr.mxu0 0.0
  %575 = vmatpush1.msra.mxu0 0.0
  %576 = vmatprep.subr.mxu0 0.0
  %577 = vmatpush1.msra.mxu0 0.0
  %578 = vmatprep.subr.mxu0 0.0
  %579 = vmatpush1.msra.mxu0 0.0
  %580 = vmatprep.subr.mxu0 0.0
  %581 = vmatpush1.msra.mxu0 0.0
  %582 = vmatprep.subr.mxu0 0.0
  %583 = vmatpush1.msra.mxu0 0.0
  %584 = vmatprep.subr.mxu0 0.0
  %585 = vmatpush1.msra.mxu0 0.0
  %586 = vmatprep.subr.mxu0 0.0
  %587 = vmatpush1.msra.mxu0 0.0
  %588 = vmatprep.subr.mxu0 0.0
  %589 = vmatpush1.msra.mxu0 0.0
  %590 = vmatprep.subr.mxu0 0.0
  %591 = vmatpush1.msra.mxu0 0.0
  %592 = vmatprep.subr.mxu0 0.0
  %593 = vmatpush1.msra.mxu0 0.0
  %594 = vmatprep.subr.mxu0 0.0
  %595 = vmatpush1.msra.mxu0 0.0
  %596 = vmatprep.subr.mxu0 0.0
  %597 = vmatpush1.msra.mxu0 0.0
  %598 = vmatprep.subr.mxu0 0.0
  %599 = vmatpush1.msra.mxu0 0.0
  %600 = vmatprep.subr.mxu0 0.0
  %601 = vmatpush1.msra.mxu0 0.0
  %602 = vmatprep.mubr.f32.mxu0 0.0
  %603 = vmatmul.mubr.f32.gmra.mrb[0].mxu0 %v533
  %v604 = vpop.f32.mrb[0].mxu0
  %v605 = vadd.f32 0.0, %v604
  %v606 = vpop.f32.mrb[0].mxu0
  %607 = vdwg.mxu0
  %608 = vrot.lane.b32.xlu0 %v437, 120
  %v609 = vpop.permute.xlu0 %608
  %610 = vrot.lane.b32.xlu0 %v437, 88
  %v611 = vpop.permute.xlu0 %610
  %v612 = vsel %vm442, %v609, 0
  %v614 = vsel %vm442, %v611, 0
  %616 = vmatprep.subr.mxu0 0.0
  %617 = vmatpush1.xpose.msra.mxu0 %v614
  %618 = vmatprep.subr.mxu0 0.0
  %619 = vmatpush1.xpose.msra.mxu0 0.0
  %620 = vmatprep.subr.mxu0 0.0
  %621 = vmatpush1.xpose.msra.mxu0 0.0
  %622 = vmatprep.subr.mxu0 0.0
  %623 = vmatpush1.xpose.msra.mxu0 0.0
  %624 = vmatprep.subr.mxu0 0.0
  %625 = vmatpush1.xpose.msra.mxu0 0.0
  %626 = vmatprep.subr.mxu0 0.0
  %627 = vmatpush1.xpose.msra.mxu0 0.0
  %628 = vmatprep.subr.mxu0 0.0
  %629 = vmatpush1.xpose.msra.mxu0 0.0
  %630 = vmatprep.subr.mxu0 0.0
  %631 = vmatpush1.xpose.msra.mxu0 0.0
  %632 = vmatprep.subr.mxu0 0.0
  %633 = vmatpush1.xpose.msra.mxu0 0.0
  %634 = vmatprep.subr.mxu0 0.0
  %635 = vmatpush1.xpose.msra.mxu0 0.0
  %636 = vmatprep.subr.mxu0 0.0
  %637 = vmatpush1.xpose.msra.mxu0 0.0
  %638 = vmatprep.subr.mxu0 0.0
  %639 = vmatpush1.xpose.msra.mxu0 0.0
  %640 = vmatprep.subr.mxu0 0.0
  %641 = vmatpush1.xpose.msra.mxu0 0.0
  %642 = vmatprep.subr.mxu0 0.0
  %643 = vmatpush1.xpose.msra.mxu0 0.0
  %644 = vmatprep.subr.mxu0 0.0
  %645 = vmatpush1.xpose.msra.mxu0 0.0
  %646 = vmatprep.subr.mxu0 0.0
  %647 = vmatpush1.xpose.msra.mxu0 0.0
  %648 = vmatprep.subr.mxu0 0.0
  %649 = vmatpush1.xpose.msra.mxu0 0.0
  %650 = vmatprep.subr.mxu0 0.0
  %651 = vmatpush1.xpose.msra.mxu0 0.0
  %652 = vmatprep.subr.mxu0 0.0
  %653 = vmatpush1.xpose.msra.mxu0 0.0
  %654 = vmatprep.subr.mxu0 0.0
  %655 = vmatpush1.xpose.msra.mxu0 0.0
  %656 = vmatprep.subr.mxu0 0.0
  %657 = vmatpush1.xpose.msra.mxu0 0.0
  %658 = vmatprep.subr.mxu0 0.0
  %659 = vmatpush1.xpose.msra.mxu0 0.0
  %660 = vmatprep.subr.mxu0 0.0
  %661 = vmatpush1.xpose.msra.mxu0 0.0
  %662 = vmatprep.subr.mxu0 0.0
  %663 = vmatpush1.xpose.msra.mxu0 0.0
  %664 = vmatprep.subr.mxu0 0.0
  %665 = vmatpush1.xpose.msra.mxu0 0.0
  %666 = vmatprep.subr.mxu0 0.0
  %667 = vmatpush1.xpose.msra.mxu0 0.0
  %668 = vmatprep.subr.mxu0 0.0
  %669 = vmatpush1.xpose.msra.mxu0 0.0
  %670 = vmatprep.subr.mxu0 0.0
  %671 = vmatpush1.xpose.msra.mxu0 0.0
  %672 = vmatprep.subr.mxu0 0.0
  %673 = vmatpush1.xpose.msra.mxu0 0.0
  %674 = vmatprep.subr.mxu0 0.0
  %675 = vmatpush1.xpose.msra.mxu0 0.0
  %676 = vmatprep.subr.mxu0 0.0
  %677 = vmatpush1.xpose.msra.mxu0 0.0
  %678 = vmatprep.subr.mxu0 0.0
  %679 = vmatpush1.xpose.msra.mxu0 0.0
  %680 = vmatprep.mubr.f32.mxu0 0.0
  %681 = vmatmul.mubr.f32.gmra.mrb[0].mxu0 %v612
  %v682 = vpop.f32.mrb[0].mxu0
  %v683 = vadd.f32 %v438, %v682
  %v684 = vpop.f32.mrb[0].mxu0
  %685 = vdwg.mxu0
  %v686 = vsel %vm517, %v683, -inf
  %687 = vmax.xlane.f32.xlu0 %v686
  %v688 = vpop.xlane.xlu0 %687
  %v689 = vsub.f32 %v683, %v688
  %v690 = vmul.f32 %v689, 1.442695
  %v691 = vpow.pop %v690
  %v692 = vsel %vm517, %v691, 0.0
  %693 = vadd.xlane.f32.xlu0 %v692
  %v694 = vpop.xlane.xlu0 %693
  %v695 = vrcp.pop %v694
  %v696 = vmul.f32 %v691, %v695
  %697 = vrot.lane.b32.xlu0 %v437, 56
  %v698 = vpop.permute.xlu0 %697
  %v700 = vsel %vm531, %v696, 0
  %v702 = vsel %vm535, %v698, 0
  %704 = vmatprep.subr.mxu0 0.0
  %705 = vmatpush1.msra.mxu0 %v702
  %706 = vmatprep.subr.mxu0 0.0
  %707 = vmatpush1.msra.mxu0 0.0
  %708 = vmatprep.subr.mxu0 0.0
  %709 = vmatpush1.msra.mxu0 0.0
  %710 = vmatprep.subr.mxu0 0.0
  %711 = vmatpush1.msra.mxu0 0.0
  %712 = vmatprep.subr.mxu0 0.0
  %713 = vmatpush1.msra.mxu0 0.0
  %714 = vmatprep.subr.mxu0 0.0
  %715 = vmatpush1.msra.mxu0 0.0
  %716 = vmatprep.subr.mxu0 0.0
  %717 = vmatpush1.msra.mxu0 0.0
  %718 = vmatprep.subr.mxu0 0.0
  %719 = vmatpush1.msra.mxu0 0.0
  %720 = vmatprep.subr.mxu0 0.0
  %721 = vmatpush1.msra.mxu0 0.0
  %722 = vmatprep.subr.mxu0 0.0
  %723 = vmatpush1.msra.mxu0 0.0
  %724 = vmatprep.subr.mxu0 0.0
  %725 = vmatpush1.msra.mxu0 0.0
  %726 = vmatprep.subr.mxu0 0.0
  %727 = vmatpush1.msra.mxu0 0.0
  %728 = vmatprep.subr.mxu0 0.0
  %729 = vmatpush1.msra.mxu0 0.0
  %730 = vmatprep.subr.mxu0 0.0
  %731 = vmatpush1.msra.mxu0 0.0
  %732 = vmatprep.subr.mxu0 0.0
  %733 = vmatpush1.msra.mxu0 0.0
  %734 = vmatprep.subr.mxu0 0.0
  %735 = vmatpush1.msra.mxu0 0.0
  %736 = vmatprep.subr.mxu0 0.0
  %737 = vmatpush1.msra.mxu0 0.0
  %738 = vmatprep.subr.mxu0 0.0
  %739 = vmatpush1.msra.mxu0 0.0
  %740 = vmatprep.subr.mxu0 0.0
  %741 = vmatpush1.msra.mxu0 0.0
  %742 = vmatprep.subr.mxu0 0.0
  %743 = vmatpush1.msra.mxu0 0.0
  %744 = vmatprep.subr.mxu0 0.0
  %745 = vmatpush1.msra.mxu0 0.0
  %746 = vmatprep.subr.mxu0 0.0
  %747 = vmatpush1.msra.mxu0 0.0
  %748 = vmatprep.subr.mxu0 0.0
  %749 = vmatpush1.msra.mxu0 0.0
  %750 = vmatprep.subr.mxu0 0.0
  %751 = vmatpush1.msra.mxu0 0.0
  %752 = vmatprep.subr.mxu0 0.0
  %753 = vmatpush1.msra.mxu0 0.0
  %754 = vmatprep.subr.mxu0 0.0
  %755 = vmatpush1.msra.mxu0 0.0
  %756 = vmatprep.subr.mxu0 0.0
  %757 = vmatpush1.msra.mxu0 0.0
  %758 = vmatprep.subr.mxu0 0.0
  %759 = vmatpush1.msra.mxu0 0.0
  %760 = vmatprep.subr.mxu0 0.0
  %761 = vmatpush1.msra.mxu0 0.0
  %762 = vmatprep.subr.mxu0 0.0
  %763 = vmatpush1.msra.mxu0 0.0
  %764 = vmatprep.subr.mxu0 0.0
  %765 = vmatpush1.msra.mxu0 0.0
  %766 = vmatprep.subr.mxu0 0.0
  %767 = vmatpush1.msra.mxu0 0.0
  %768 = vmatprep.mubr.f32.mxu0 0.0
  %769 = vmatmul.mubr.f32.gmra.mrb[0].mxu0 %v700
  %v770 = vpop.f32.mrb[0].mxu0
  %v771 = vadd.f32 0.0, %v770
  %v772 = vpop.f32.mrb[0].mxu0
  %773 = vdwg.mxu0
  %774 = vrot.lane.b32.xlu0 %v246, 64
  %v775 = vpop.permute.xlu0 %774
  %v778 = vsel %vm442, %v771, 0
  %780 = vmatprep.subr.mxu0 0.0
  %781 = vmatpush1.msra.mxu0 %v775
  %782 = vmatprep.subr.mxu0 0.0
  %783 = vmatpush1.msra.mxu0 0.0
  %784 = vmatprep.subr.mxu0 0.0
  %785 = vmatpush1.msra.mxu0 0.0
  %786 = vmatprep.subr.mxu0 0.0
  %787 = vmatpush1.msra.mxu0 0.0
  %788 = vmatprep.subr.mxu0 0.0
  %789 = vmatpush1.msra.mxu0 0.0
  %790 = vmatprep.subr.mxu0 0.0
  %791 = vmatpush1.msra.mxu0 0.0
  %792 = vmatprep.subr.mxu0 0.0
  %793 = vmatpush1.msra.mxu0 0.0
  %794 = vmatprep.subr.mxu0 0.0
  %795 = vmatpush1.msra.mxu0 0.0
  %796 = vmatprep.subr.mxu0 0.0
  %797 = vmatpush1.msra.mxu0 0.0
  %798 = vmatprep.subr.mxu0 0.0
  %799 = vmatpush1.msra.mxu0 0.0
  %800 = vmatprep.subr.mxu0 0.0
  %801 = vmatpush1.msra.mxu0 0.0
  %802 = vmatprep.subr.mxu0 0.0
  %803 = vmatpush1.msra.mxu0 0.0
  %804 = vmatprep.subr.mxu0 0.0
  %805 = vmatpush1.msra.mxu0 0.0
  %806 = vmatprep.subr.mxu0 0.0
  %807 = vmatpush1.msra.mxu0 0.0
  %808 = vmatprep.subr.mxu0 0.0
  %809 = vmatpush1.msra.mxu0 0.0
  %810 = vmatprep.subr.mxu0 0.0
  %811 = vmatpush1.msra.mxu0 0.0
  %812 = vmatprep.subr.mxu0 0.0
  %813 = vmatpush1.msra.mxu0 0.0
  %814 = vmatprep.subr.mxu0 0.0
  %815 = vmatpush1.msra.mxu0 0.0
  %816 = vmatprep.subr.mxu0 0.0
  %817 = vmatpush1.msra.mxu0 0.0
  %818 = vmatprep.subr.mxu0 0.0
  %819 = vmatpush1.msra.mxu0 0.0
  %820 = vmatprep.subr.mxu0 0.0
  %821 = vmatpush1.msra.mxu0 0.0
  %822 = vmatprep.subr.mxu0 0.0
  %823 = vmatpush1.msra.mxu0 0.0
  %824 = vmatprep.subr.mxu0 0.0
  %825 = vmatpush1.msra.mxu0 0.0
  %826 = vmatprep.subr.mxu0 0.0
  %827 = vmatpush1.msra.mxu0 0.0
  %828 = vmatprep.subr.mxu0 0.0
  %829 = vmatpush1.msra.mxu0 0.0
  %830 = vmatprep.subr.mxu0 0.0
  %831 = vmatpush1.msra.mxu0 0.0
  %832 = vmatprep.subr.mxu0 0.0
  %833 = vmatpush1.msra.mxu0 0.0
  %834 = vmatprep.subr.mxu0 0.0
  %835 = vmatpush1.msra.mxu0 0.0
  %836 = vmatprep.subr.mxu0 0.0
  %837 = vmatpush1.msra.mxu0 0.0
  %838 = vmatprep.subr.mxu0 0.0
  %839 = vmatpush1.msra.mxu0 0.0
  %840 = vmatprep.subr.mxu0 0.0
  %841 = vmatpush1.msra.mxu0 0.0
  %842 = vmatprep.subr.mxu0 0.0
  %843 = vmatpush1.msra.mxu0 0.0
  %844 = vmatprep.mubr.f32.mxu0 0.0
  %845 = vmatmul.mubr.f32.gmra.mrb[0].mxu0 %v778
  %v846 = vpop.f32.mrb[0].mxu0
  %v847 = vadd.f32 0.0, %v846
  %v848 = vpop.f32.mrb[0].mxu0
  %849 = vdwg.mxu0
  %850 = vrot.lane.b32.xlu0 %v245, 64
  %v851 = vpop.permute.xlu0 %850
  %v854 = vsel %vm442, %v605, 0
  %856 = vmatprep.subr.mxu0 0.0
  %857 = vmatpush1.msra.mxu0 %v851
  %858 = vmatprep.subr.mxu0 0.0
  %859 = vmatpush1.msra.mxu0 0.0
  %860 = vmatprep.subr.mxu0 0.0
  %861 = vmatpush1.msra.mxu0 0.0
  %862 = vmatprep.subr.mxu0 0.0
  %863 = vmatpush1.msra.mxu0 0.0
  %864 = vmatprep.subr.mxu0 0.0
  %865 = vmatpush1.msra.mxu0 0.0
  %866 = vmatprep.subr.mxu0 0.0
  %867 = vmatpush1.msra.mxu0 0.0
  %868 = vmatprep.subr.mxu0 0.0
  %869 = vmatpush1.msra.mxu0 0.0
  %870 = vmatprep.subr.mxu0 0.0
  %871 = vmatpush1.msra.mxu0 0.0
  %872 = vmatprep.subr.mxu0 0.0
  %873 = vmatpush1.msra.mxu0 0.0
  %874 = vmatprep.subr.mxu0 0.0
  %875 = vmatpush1.msra.mxu0 0.0
  %876 = vmatprep.subr.mxu0 0.0
  %877 = vmatpush1.msra.mxu0 0.0
  %878 = vmatprep.subr.mxu0 0.0
  %879 = vmatpush1.msra.mxu0 0.0
  %880 = vmatprep.subr.mxu0 0.0
  %881 = vmatpush1.msra.mxu0 0.0
  %882 = vmatprep.subr.mxu0 0.0
  %883 = vmatpush1.msra.mxu0 0.0
  %884 = vmatprep.subr.mxu0 0.0
  %885 = vmatpush1.msra.mxu0 0.0
  %886 = vmatprep.subr.mxu0 0.0
  %887 = vmatpush1.msra.mxu0 0.0
  %888 = vmatprep.subr.mxu0 0.0
  %889 = vmatpush1.msra.mxu0 0.0
  %890 = vmatprep.subr.mxu0 0.0
  %891 = vmatpush1.msra.mxu0 0.0
  %892 = vmatprep.subr.mxu0 0.0
  %893 = vmatpush1.msra.mxu0 0.0
  %894 = vmatprep.subr.mxu0 0.0
  %895 = vmatpush1.msra.mxu0 0.0
  %896 = vmatprep.subr.mxu0 0.0
  %897 = vmatpush1.msra.mxu0 0.0
  %898 = vmatprep.subr.mxu0 0.0
  %899 = vmatpush1.msra.mxu0 0.0
  %900 = vmatprep.subr.mxu0 0.0
  %901 = vmatpush1.msra.mxu0 0.0
  %902 = vmatprep.subr.mxu0 0.0
  %903 = vmatpush1.msra.mxu0 0.0
  %904 = vmatprep.subr.mxu0 0.0
  %905 = vmatpush1.msra.mxu0 0.0
  %906 = vmatprep.subr.mxu0 0.0
  %907 = vmatpush1.msra.mxu0 0.0
  %908 = vmatprep.subr.mxu0 0.0
  %909 = vmatpush1.msra.mxu0 0.0
  %910 = vmatprep.subr.mxu0 0.0
  %911 = vmatpush1.msra.mxu0 0.0
  %912 = vmatprep.subr.mxu0 0.0
  %913 = vmatpush1.msra.mxu0 0.0
  %914 = vmatprep.subr.mxu0 0.0
  %915 = vmatpush1.msra.mxu0 0.0
  %916 = vmatprep.subr.mxu0 0.0
  %917 = vmatpush1.msra.mxu0 0.0
  %918 = vmatprep.subr.mxu0 0.0
  %919 = vmatpush1.msra.mxu0 0.0
  %920 = vmatprep.mubr.f32.mxu0 0.0
  %921 = vmatmul.mubr.f32.gmra.mrb[0].mxu0 %v854
  %v922 = vpop.f32.mrb[0].mxu0
  %v923 = vadd.f32 %v847, %v922
  %v924 = vpop.f32.mrb[0].mxu0
  %925 = vdwg.mxu0
  %926 = vrot.lane.b32.xlu0 %v437, 112
  %v927 = vpop.permute.xlu0 %926
  %928 = vrot.lane.b32.xlu0 %v437, 80
  %v929 = vpop.permute.xlu0 %928
  %v930 = vsel %vm442, %v927, 0
  %v932 = vsel %vm442, %v929, 0
  %934 = vmatprep.subr.mxu0 0.0
  %935 = vmatpush1.xpose.msra.mxu0 %v932
  %936 = vmatprep.subr.mxu0 0.0
  %937 = vmatpush1.xpose.msra.mxu0 0.0
  %938 = vmatprep.subr.mxu0 0.0
  %939 = vmatpush1.xpose.msra.mxu0 0.0
  %940 = vmatprep.subr.mxu0 0.0
  %941 = vmatpush1.xpose.msra.mxu0 0.0
  %942 = vmatprep.subr.mxu0 0.0
  %943 = vmatpush1.xpose.msra.mxu0 0.0
  %944 = vmatprep.subr.mxu0 0.0
  %945 = vmatpush1.xpose.msra.mxu0 0.0
  %946 = vmatprep.subr.mxu0 0.0
  %947 = vmatpush1.xpose.msra.mxu0 0.0
  %948 = vmatprep.subr.mxu0 0.0
  %949 = vmatpush1.xpose.msra.mxu0 0.0
  %950 = vmatprep.subr.mxu0 0.0
  %951 = vmatpush1.xpose.msra.mxu0 0.0
  %952 = vmatprep.subr.mxu0 0.0
  %953 = vmatpush1.xpose.msra.mxu0 0.0
  %954 = vmatprep.subr.mxu0 0.0
  %955 = vmatpush1.xpose.msra.mxu0 0.0
  %956 = vmatprep.subr.mxu0 0.0
  %957 = vmatpush1.xpose.msra.mxu0 0.0
  %958 = vmatprep.subr.mxu0 0.0
  %959 = vmatpush1.xpose.msra.mxu0 0.0
  %960 = vmatprep.subr.mxu0 0.0
  %961 = vmatpush1.xpose.msra.mxu0 0.0
  %962 = vmatprep.subr.mxu0 0.0
  %963 = vmatpush1.xpose.msra.mxu0 0.0
  %964 = vmatprep.subr.mxu0 0.0
  %965 = vmatpush1.xpose.msra.mxu0 0.0
  %966 = vmatprep.subr.mxu0 0.0
  %967 = vmatpush1.xpose.msra.mxu0 0.0
  %968 = vmatprep.subr.mxu0 0.0
  %969 = vmatpush1.xpose.msra.mxu0 0.0
  %970 = vmatprep.subr.mxu0 0.0
  %971 = vmatpush1.xpose.msra.mxu0 0.0
  %972 = vmatprep.subr.mxu0 0.0
  %973 = vmatpush1.xpose.msra.mxu0 0.0
  %974 = vmatprep.subr.mxu0 0.0
  %975 = vmatpush1.xpose.msra.mxu0 0.0
  %976 = vmatprep.subr.mxu0 0.0
  %977 = vmatpush1.xpose.msra.mxu0 0.0
  %978 = vmatprep.subr.mxu0 0.0
  %979 = vmatpush1.xpose.msra.mxu0 0.0
  %980 = vmatprep.subr.mxu0 0.0
  %981 = vmatpush1.xpose.msra.mxu0 0.0
  %982 = vmatprep.subr.mxu0 0.0
  %983 = vmatpush1.xpose.msra.mxu0 0.0
  %984 = vmatprep.subr.mxu0 0.0
  %985 = vmatpush1.xpose.msra.mxu0 0.0
  %986 = vmatprep.subr.mxu0 0.0
  %987 = vmatpush1.xpose.msra.mxu0 0.0
  %988 = vmatprep.subr.mxu0 0.0
  %989 = vmatpush1.xpose.msra.mxu0 0.0
  %990 = vmatprep.subr.mxu0 0.0
  %991 = vmatpush1.xpose.msra.mxu0 0.0
  %992 = vmatprep.subr.mxu0 0.0
  %993 = vmatpush1.xpose.msra.mxu0 0.0
  %994 = vmatprep.subr.mxu0 0.0
  %995 = vmatpush1.xpose.msra.mxu0 0.0
  %996 = vmatprep.subr.mxu0 0.0
  %997 = vmatpush1.xpose.msra.mxu0 0.0
  %998 = vmatprep.mubr.f32.mxu0 0.0
  %999 = vmatmul.mubr.f32.gmra.mrb[0].mxu0 %v930
  %v1000 = vpop.f32.mrb[0].mxu0
  %v1001 = vadd.f32 %v438, %v1000
  %v1002 = vpop.f32.mrb[0].mxu0
  %1003 = vdwg.mxu0
  %v1004 = vsel %vm517, %v1001, -inf
  %1005 = vmax.xlane.f32.xlu0 %v1004
  %v1006 = vpop.xlane.xlu0 %1005
  %v1007 = vsub.f32 %v1001, %v1006
  %v1008 = vmul.f32 %v1007, 1.442695
  %v1009 = vpow.pop %v1008
  %v1010 = vsel %vm517, %v1009, 0.0
  %1011 = vadd.xlane.f32.xlu0 %v1010
  %v1012 = vpop.xlane.xlu0 %1011
  %v1013 = vrcp.pop %v1012
  %v1014 = vmul.f32 %v1009, %v1013
  %1015 = vrot.lane.b32.xlu0 %v437, 48
  %v1016 = vpop.permute.xlu0 %1015
  %v1018 = vsel %vm531, %v1014, 0
  %v1020 = vsel %vm535, %v1016, 0
  %1022 = vmatprep.subr.mxu0 0.0
  %1023 = vmatpush1.msra.mxu0 %v1020
  %1024 = vmatprep.subr.mxu0 0.0
  %1025 = vmatpush1.msra.mxu0 0.0
  %1026 = vmatprep.subr.mxu0 0.0
  %1027 = vmatpush1.msra.mxu0 0.0
  %1028 = vmatprep.subr.mxu0 0.0
  %1029 = vmatpush1.msra.mxu0 0.0
  %1030 = vmatprep.subr.mxu0 0.0
  %1031 = vmatpush1.msra.mxu0 0.0
  %1032 = vmatprep.subr.mxu0 0.0
  %1033 = vmatpush1.msra.mxu0 0.0
  %1034 = vmatprep.subr.mxu0 0.0
  %1035 = vmatpush1.msra.mxu0 0.0
  %1036 = vmatprep.subr.mxu0 0.0
  %1037 = vmatpush1.msra.mxu0 0.0
  %1038 = vmatprep.subr.mxu0 0.0
  %1039 = vmatpush1.msra.mxu0 0.0
  %1040 = vmatprep.subr.mxu0 0.0
  %1041 = vmatpush1.msra.mxu0 0.0
  %1042 = vmatprep.subr.mxu0 0.0
  %1043 = vmatpush1.msra.mxu0 0.0
  %1044 = vmatprep.subr.mxu0 0.0
  %1045 = vmatpush1.msra.mxu0 0.0
  %1046 = vmatprep.subr.mxu0 0.0
  %1047 = vmatpush1.msra.mxu0 0.0
  %1048 = vmatprep.subr.mxu0 0.0
  %1049 = vmatpush1.msra.mxu0 0.0
  %1050 = vmatprep.subr.mxu0 0.0
  %1051 = vmatpush1.msra.mxu0 0.0
  %1052 = vmatprep.subr.mxu0 0.0
  %1053 = vmatpush1.msra.mxu0 0.0
  %1054 = vmatprep.subr.mxu0 0.0
  %1055 = vmatpush1.msra.mxu0 0.0
  %1056 = vmatprep.subr.mxu0 0.0
  %1057 = vmatpush1.msra.mxu0 0.0
  %1058 = vmatprep.subr.mxu0 0.0
  %1059 = vmatpush1.msra.mxu0 0.0
  %1060 = vmatprep.subr.mxu0 0.0
  %1061 = vmatpush1.msra.mxu0 0.0
  %1062 = vmatprep.subr.mxu0 0.0
  %1063 = vmatpush1.msra.mxu0 0.0
  %1064 = vmatprep.subr.mxu0 0.0
  %1065 = vmatpush1.msra.mxu0 0.0
  %1066 = vmatprep.subr.mxu0 0.0
  %1067 = vmatpush1.msra.mxu0 0.0
  %1068 = vmatprep.subr.mxu0 0.0
  %1069 = vmatpush1.msra.mxu0 0.0
  %1070 = vmatprep.subr.mxu0 0.0
  %1071 = vmatpush1.msra.mxu0 0.0
  %1072 = vmatprep.subr.mxu0 0.0
  %1073 = vmatpush1.msra.mxu0 0.0
  %1074 = vmatprep.subr.mxu0 0.0
  %1075 = vmatpush1.msra.mxu0 0.0
  %1076 = vmatprep.subr.mxu0 0.0
  %1077 = vmatpush1.msra.mxu0 0.0
  %1078 = vmatprep.subr.mxu0 0.0
  %1079 = vmatpush1.msra.mxu0 0.0
  %1080 = vmatprep.subr.mxu0 0.0
  %1081 = vmatpush1.msra.mxu0 0.0
  %1082 = vmatprep.subr.mxu0 0.0
  %1083 = vmatpush1.msra.mxu0 0.0
  %1084 = vmatprep.subr.mxu0 0.0
  %1085 = vmatpush1.msra.mxu0 0.0
  %1086 = vmatprep.mubr.f32.mxu0 0.0
  %1087 = vmatmul.mubr.f32.gmra.mrb[0].mxu0 %v1018
  %v1088 = vpop.f32.mrb[0].mxu0
  %v1089 = vadd.f32 0.0, %v1088
  %v1090 = vpop.f32.mrb[0].mxu0
  %1091 = vdwg.mxu0
  %1092 = vrot.lane.b32.xlu0 %v247, 64
  %v1093 = vpop.permute.xlu0 %1092
  %v1096 = vsel %vm442, %v1089, 0
  %1098 = vmatprep.subr.mxu0 0.0
  %1099 = vmatpush1.msra.mxu0 %v1093
  %1100 = vmatprep.subr.mxu0 0.0
  %1101 = vmatpush1.msra.mxu0 0.0
  %1102 = vmatprep.subr.mxu0 0.0
  %1103 = vmatpush1.msra.mxu0 0.0
  %1104 = vmatprep.subr.mxu0 0.0
  %1105 = vmatpush1.msra.mxu0 0.0
  %1106 = vmatprep.subr.mxu0 0.0
  %1107 = vmatpush1.msra.mxu0 0.0
  %1108 = vmatprep.subr.mxu0 0.0
  %1109 = vmatpush1.msra.mxu0 0.0
  %1110 = vmatprep.subr.mxu0 0.0
  %1111 = vmatpush1.msra.mxu0 0.0
  %1112 = vmatprep.subr.mxu0 0.0
  %1113 = vmatpush1.msra.mxu0 0.0
  %1114 = vmatprep.subr.mxu0 0.0
  %1115 = vmatpush1.msra.mxu0 0.0
  %1116 = vmatprep.subr.mxu0 0.0
  %1117 = vmatpush1.msra.mxu0 0.0
  %1118 = vmatprep.subr.mxu0 0.0
  %1119 = vmatpush1.msra.mxu0 0.0
  %1120 = vmatprep.subr.mxu0 0.0
  %1121 = vmatpush1.msra.mxu0 0.0
  %1122 = vmatprep.subr.mxu0 0.0
  %1123 = vmatpush1.msra.mxu0 0.0
  %1124 = vmatprep.subr.mxu0 0.0
  %1125 = vmatpush1.msra.mxu0 0.0
  %1126 = vmatprep.subr.mxu0 0.0
  %1127 = vmatpush1.msra.mxu0 0.0
  %1128 = vmatprep.subr.mxu0 0.0
  %1129 = vmatpush1.msra.mxu0 0.0
  %1130 = vmatprep.subr.mxu0 0.0
  %1131 = vmatpush1.msra.mxu0 0.0
  %1132 = vmatprep.subr.mxu0 0.0
  %1133 = vmatpush1.msra.mxu0 0.0
  %1134 = vmatprep.subr.mxu0 0.0
  %1135 = vmatpush1.msra.mxu0 0.0
  %1136 = vmatprep.subr.mxu0 0.0
  %1137 = vmatpush1.msra.mxu0 0.0
  %1138 = vmatprep.subr.mxu0 0.0
  %1139 = vmatpush1.msra.mxu0 0.0
  %1140 = vmatprep.subr.mxu0 0.0
  %1141 = vmatpush1.msra.mxu0 0.0
  %1142 = vmatprep.subr.mxu0 0.0
  %1143 = vmatpush1.msra.mxu0 0.0
  %1144 = vmatprep.subr.mxu0 0.0
  %1145 = vmatpush1.msra.mxu0 0.0
  %1146 = vmatprep.subr.mxu0 0.0
  %1147 = vmatpush1.msra.mxu0 0.0
  %1148 = vmatprep.subr.mxu0 0.0
  %1149 = vmatpush1.msra.mxu0 0.0
  %1150 = vmatprep.subr.mxu0 0.0
  %1151 = vmatpush1.msra.mxu0 0.0
  %1152 = vmatprep.subr.mxu0 0.0
  %1153 = vmatpush1.msra.mxu0 0.0
  %1154 = vmatprep.subr.mxu0 0.0
  %1155 = vmatpush1.msra.mxu0 0.0
  %1156 = vmatprep.subr.mxu0 0.0
  %1157 = vmatpush1.msra.mxu0 0.0
  %1158 = vmatprep.subr.mxu0 0.0
  %1159 = vmatpush1.msra.mxu0 0.0
  %1160 = vmatprep.subr.mxu0 0.0
  %1161 = vmatpush1.msra.mxu0 0.0
  %1162 = vmatprep.mubr.f32.mxu0 0.0
  %1163 = vmatmul.mubr.f32.gmra.mrb[0].mxu0 %v1096
  %v1164 = vpop.f32.mrb[0].mxu0
  %v1165 = vadd.f32 0.0, %v1164
  %v1166 = vpop.f32.mrb[0].mxu0
  %1167 = vdwg.mxu0
  %v1168 = vadd.f32 %v923, %v1165
  %1169 = vrot.lane.b32.xlu0 %v437, 104
  %v1170 = vpop.permute.xlu0 %1169
  %1171 = vrot.lane.b32.xlu0 %v437, 72
  %v1172 = vpop.permute.xlu0 %1171
  %v1173 = vsel %vm442, %v1170, 0
  %v1175 = vsel %vm442, %v1172, 0
  %1177 = vmatprep.subr.mxu0 0.0
  %1178 = vmatpush1.xpose.msra.mxu0 %v1175
  %1179 = vmatprep.subr.mxu0 0.0
  %1180 = vmatpush1.xpose.msra.mxu0 0.0
  %1181 = vmatprep.subr.mxu0 0.0
  %1182 = vmatpush1.xpose.msra.mxu0 0.0
  %1183 = vmatprep.subr.mxu0 0.0
  %1184 = vmatpush1.xpose.msra.mxu0 0.0
  %1185 = vmatprep.subr.mxu0 0.0
  %1186 = vmatpush1.xpose.msra.mxu0 0.0
  %1187 = vmatprep.subr.mxu0 0.0
  %1188 = vmatpush1.xpose.msra.mxu0 0.0
  %1189 = vmatprep.subr.mxu0 0.0
  %1190 = vmatpush1.xpose.msra.mxu0 0.0
  %1191 = vmatprep.subr.mxu0 0.0
  %1192 = vmatpush1.xpose.msra.mxu0 0.0
  %1193 = vmatprep.subr.mxu0 0.0
  %1194 = vmatpush1.xpose.msra.mxu0 0.0
  %1195 = vmatprep.subr.mxu0 0.0
  %1196 = vmatpush1.xpose.msra.mxu0 0.0
  %1197 = vmatprep.subr.mxu0 0.0
  %1198 = vmatpush1.xpose.msra.mxu0 0.0
  %1199 = vmatprep.subr.mxu0 0.0
  %1200 = vmatpush1.xpose.msra.mxu0 0.0
  %1201 = vmatprep.subr.mxu0 0.0
  %1202 = vmatpush1.xpose.msra.mxu0 0.0
  %1203 = vmatprep.subr.mxu0 0.0
  %1204 = vmatpush1.xpose.msra.mxu0 0.0
  %1205 = vmatprep.subr.mxu0 0.0
  %1206 = vmatpush1.xpose.msra.mxu0 0.0
  %1207 = vmatprep.subr.mxu0 0.0
  %1208 = vmatpush1.xpose.msra.mxu0 0.0
  %1209 = vmatprep.subr.mxu0 0.0
  %1210 = vmatpush1.xpose.msra.mxu0 0.0
  %1211 = vmatprep.subr.mxu0 0.0
  %1212 = vmatpush1.xpose.msra.mxu0 0.0
  %1213 = vmatprep.subr.mxu0 0.0
  %1214 = vmatpush1.xpose.msra.mxu0 0.0
  %1215 = vmatprep.subr.mxu0 0.0
  %1216 = vmatpush1.xpose.msra.mxu0 0.0
  %1217 = vmatprep.subr.mxu0 0.0
  %1218 = vmatpush1.xpose.msra.mxu0 0.0
  %1219 = vmatprep.subr.mxu0 0.0
  %1220 = vmatpush1.xpose.msra.mxu0 0.0
  %1221 = vmatprep.subr.mxu0 0.0
  %1222 = vmatpush1.xpose.msra.mxu0 0.0
  %1223 = vmatprep.subr.mxu0 0.0
  %1224 = vmatpush1.xpose.msra.mxu0 0.0
  %1225 = vmatprep.subr.mxu0 0.0
  %1226 = vmatpush1.xpose.msra.mxu0 0.0
  %1227 = vmatprep.subr.mxu0 0.0
  %1228 = vmatpush1.xpose.msra.mxu0 0.0
  %1229 = vmatprep.subr.mxu0 0.0
  %1230 = vmatpush1.xpose.msra.mxu0 0.0
  %1231 = vmatprep.subr.mxu0 0.0
  %1232 = vmatpush1.xpose.msra.mxu0 0.0
  %1233 = vmatprep.subr.mxu0 0.0
  %1234 = vmatpush1.xpose.msra.mxu0 0.0
  %1235 = vmatprep.subr.mxu0 0.0
  %1236 = vmatpush1.xpose.msra.mxu0 0.0
  %1237 = vmatprep.subr.mxu0 0.0
  %1238 = vmatpush1.xpose.msra.mxu0 0.0
  %1239 = vmatprep.subr.mxu0 0.0
  %1240 = vmatpush1.xpose.msra.mxu0 0.0
  %1241 = vmatprep.mubr.f32.mxu0 0.0
  %1242 = vmatmul.mubr.f32.gmra.mrb[0].mxu0 %v1173
  %v1243 = vpop.f32.mrb[0].mxu0
  %v1244 = vadd.f32 %v438, %v1243
  %v1245 = vpop.f32.mrb[0].mxu0
  %1246 = vdwg.mxu0
  %v1247 = vsel %vm517, %v1244, -inf
  %1248 = vmax.xlane.f32.xlu0 %v1247
  %v1249 = vpop.xlane.xlu0 %1248
  %v1250 = vsub.f32 %v1244, %v1249
  %v1251 = vmul.f32 %v1250, 1.442695
  %v1252 = vpow.pop %v1251
  %v1253 = vsel %vm517, %v1252, 0.0
  %1254 = vadd.xlane.f32.xlu0 %v1253
  %v1255 = vpop.xlane.xlu0 %1254
  %v1256 = vrcp.pop %v1255
  %v1257 = vmul.f32 %v1252, %v1256
  %1258 = vrot.lane.b32.xlu0 %v437, 40
  %v1259 = vpop.permute.xlu0 %1258
  %v1261 = vsel %vm531, %v1257, 0
  %v1263 = vsel %vm535, %v1259, 0
  %1265 = vmatprep.subr.mxu0 0.0
  %1266 = vmatpush1.msra.mxu0 %v1263
  %1267 = vmatprep.subr.mxu0 0.0
  %1268 = vmatpush1.msra.mxu0 0.0
  %1269 = vmatprep.subr.mxu0 0.0
  %1270 = vmatpush1.msra.mxu0 0.0
  %1271 = vmatprep.subr.mxu0 0.0
  %1272 = vmatpush1.msra.mxu0 0.0
  %1273 = vmatprep.subr.mxu0 0.0
  %1274 = vmatpush1.msra.mxu0 0.0
  %1275 = vmatprep.subr.mxu0 0.0
  %1276 = vmatpush1.msra.mxu0 0.0
  %1277 = vmatprep.subr.mxu0 0.0
  %1278 = vmatpush1.msra.mxu0 0.0
  %1279 = vmatprep.subr.mxu0 0.0
  %1280 = vmatpush1.msra.mxu0 0.0
  %1281 = vmatprep.subr.mxu0 0.0
  %1282 = vmatpush1.msra.mxu0 0.0
  %1283 = vmatprep.subr.mxu0 0.0
  %1284 = vmatpush1.msra.mxu0 0.0
  %1285 = vmatprep.subr.mxu0 0.0
  %1286 = vmatpush1.msra.mxu0 0.0
  %1287 = vmatprep.subr.mxu0 0.0
  %1288 = vmatpush1.msra.mxu0 0.0
  %1289 = vmatprep.subr.mxu0 0.0
  %1290 = vmatpush1.msra.mxu0 0.0
  %1291 = vmatprep.subr.mxu0 0.0
  %1292 = vmatpush1.msra.mxu0 0.0
  %1293 = vmatprep.subr.mxu0 0.0
  %1294 = vmatpush1.msra.mxu0 0.0
  %1295 = vmatprep.subr.mxu0 0.0
  %1296 = vmatpush1.msra.mxu0 0.0
  %1297 = vmatprep.subr.mxu0 0.0
  %1298 = vmatpush1.msra.mxu0 0.0
  %1299 = vmatprep.subr.mxu0 0.0
  %1300 = vmatpush1.msra.mxu0 0.0
  %1301 = vmatprep.subr.mxu0 0.0
  %1302 = vmatpush1.msra.mxu0 0.0
  %1303 = vmatprep.subr.mxu0 0.0
  %1304 = vmatpush1.msra.mxu0 0.0
  %1305 = vmatprep.subr.mxu0 0.0
  %1306 = vmatpush1.msra.mxu0 0.0
  %1307 = vmatprep.subr.mxu0 0.0
  %1308 = vmatpush1.msra.mxu0 0.0
  %1309 = vmatprep.subr.mxu0 0.0
  %1310 = vmatpush1.msra.mxu0 0.0
  %1311 = vmatprep.subr.mxu0 0.0
  %1312 = vmatpush1.msra.mxu0 0.0
  %1313 = vmatprep.subr.mxu0 0.0
  %1314 = vmatpush1.msra.mxu0 0.0
  %1315 = vmatprep.subr.mxu0 0.0
  %1316 = vmatpush1.msra.mxu0 0.0
  %1317 = vmatprep.subr.mxu0 0.0
  %1318 = vmatpush1.msra.mxu0 0.0
  %1319 = vmatprep.subr.mxu0 0.0
  %1320 = vmatpush1.msra.mxu0 0.0
  %1321 = vmatprep.subr.mxu0 0.0
  %1322 = vmatpush1.msra.mxu0 0.0
  %1323 = vmatprep.subr.mxu0 0.0
  %1324 = vmatpush1.msra.mxu0 0.0
  %1325 = vmatprep.subr.mxu0 0.0
  %1326 = vmatpush1.msra.mxu0 0.0
  %1327 = vmatprep.subr.mxu0 0.0
  %1328 = vmatpush1.msra.mxu0 0.0
  %1329 = vmatprep.mubr.f32.mxu0 0.0
  %1330 = vmatmul.mubr.f32.gmra.mrb[0].mxu0 %v1261
  %v1331 = vpop.f32.mrb[0].mxu0
  %v1332 = vadd.f32 0.0, %v1331
  %v1333 = vpop.f32.mrb[0].mxu0
  %1334 = vdwg.mxu0
  %1335 = vrot.lane.b32.xlu0 %v248, 64
  %v1336 = vpop.permute.xlu0 %1335
  %v1339 = vsel %vm442, %v1332, 0
  %1341 = vmatprep.subr.mxu0 0.0
  %1342 = vmatpush1.msra.mxu0 %v1336
  %1343 = vmatprep.subr.mxu0 0.0
  %1344 = vmatpush1.msra.mxu0 0.0
  %1345 = vmatprep.subr.mxu0 0.0
  %1346 = vmatpush1.msra.mxu0 0.0
  %1347 = vmatprep.subr.mxu0 0.0
  %1348 = vmatpush1.msra.mxu0 0.0
  %1349 = vmatprep.subr.mxu0 0.0
  %1350 = vmatpush1.msra.mxu0 0.0
  %1351 = vmatprep.subr.mxu0 0.0
  %1352 = vmatpush1.msra.mxu0 0.0
  %1353 = vmatprep.subr.mxu0 0.0
  %1354 = vmatpush1.msra.mxu0 0.0
  %1355 = vmatprep.subr.mxu0 0.0
  %1356 = vmatpush1.msra.mxu0 0.0
  %1357 = vmatprep.subr.mxu0 0.0
  %1358 = vmatpush1.msra.mxu0 0.0
  %1359 = vmatprep.subr.mxu0 0.0
  %1360 = vmatpush1.msra.mxu0 0.0
  %1361 = vmatprep.subr.mxu0 0.0
  %1362 = vmatpush1.msra.mxu0 0.0
  %1363 = vmatprep.subr.mxu0 0.0
  %1364 = vmatpush1.msra.mxu0 0.0
  %1365 = vmatprep.subr.mxu0 0.0
  %1366 = vmatpush1.msra.mxu0 0.0
  %1367 = vmatprep.subr.mxu0 0.0
  %1368 = vmatpush1.msra.mxu0 0.0
  %1369 = vmatprep.subr.mxu0 0.0
  %1370 = vmatpush1.msra.mxu0 0.0
  %1371 = vmatprep.subr.mxu0 0.0
  %1372 = vmatpush1.msra.mxu0 0.0
  %1373 = vmatprep.subr.mxu0 0.0
  %1374 = vmatpush1.msra.mxu0 0.0
  %1375 = vmatprep.subr.mxu0 0.0
  %1376 = vmatpush1.msra.mxu0 0.0
  %1377 = vmatprep.subr.mxu0 0.0
  %1378 = vmatpush1.msra.mxu0 0.0
  %1379 = vmatprep.subr.mxu0 0.0
  %1380 = vmatpush1.msra.mxu0 0.0
  %1381 = vmatprep.subr.mxu0 0.0
  %1382 = vmatpush1.msra.mxu0 0.0
  %1383 = vmatprep.subr.mxu0 0.0
  %1384 = vmatpush1.msra.mxu0 0.0
  %1385 = vmatprep.subr.mxu0 0.0
  %1386 = vmatpush1.msra.mxu0 0.0
  %1387 = vmatprep.subr.mxu0 0.0
  %1388 = vmatpush1.msra.mxu0 0.0
  %1389 = vmatprep.subr.mxu0 0.0
  %1390 = vmatpush1.msra.mxu0 0.0
  %1391 = vmatprep.subr.mxu0 0.0
  %1392 = vmatpush1.msra.mxu0 0.0
  %1393 = vmatprep.subr.mxu0 0.0
  %1394 = vmatpush1.msra.mxu0 0.0
  %1395 = vmatprep.subr.mxu0 0.0
  %1396 = vmatpush1.msra.mxu0 0.0
  %1397 = vmatprep.subr.mxu0 0.0
  %1398 = vmatpush1.msra.mxu0 0.0
  %1399 = vmatprep.subr.mxu0 0.0
  %1400 = vmatpush1.msra.mxu0 0.0
  %1401 = vmatprep.subr.mxu0 0.0
  %1402 = vmatpush1.msra.mxu0 0.0
  %1403 = vmatprep.subr.mxu0 0.0
  %1404 = vmatpush1.msra.mxu0 0.0
  %1405 = vmatprep.mubr.f32.mxu0 0.0
  %1406 = vmatmul.mubr.f32.gmra.mrb[0].mxu0 %v1339
  %v1407 = vpop.f32.mrb[0].mxu0
  %v1408 = vadd.f32 0.0, %v1407
  %v1409 = vpop.f32.mrb[0].mxu0
  %1410 = vdwg.mxu0
  %v1411 = vadd.f32 %v1168, %v1408
  %v1412 = vadd.f32 %v239, %v1411
  %v1413 = vld [vmem:[%s4 + $0x3] sm:$0x1]
  %v1414 = vlaneseq
  %v1415 = vshrl.u32 %v1414, 7
  %v1416 = vsub.s32 0, %v1415
  %v1417 = vrot.slane %v1413, %v1416
  %v1423 = vsel %vm279, %v1412, 0
  %1425 = vmatprep.subr.mxu0 0.0
  %1426 = vmatpush1.msra.mxu0 %v266
  %1427 = vmatprep.subr.mxu0 0.0
  %1428 = vmatpush1.msra.mxu0 %v270
  %1429 = vmatprep.subr.mxu0 0.0
  %1430 = vmatpush1.msra.mxu0 %v274
  %1431 = vmatprep.subr.mxu0 0.0
  %1432 = vmatpush1.msra.mxu0 %v278
  %1433 = vmatprep.subr.mxu0 0.0
  %1434 = vmatpush1.msra.mxu0 0.0
  %1435 = vmatprep.subr.mxu0 0.0
  %1436 = vmatpush1.msra.mxu0 0.0
  %1437 = vmatprep.subr.mxu0 0.0
  %1438 = vmatpush1.msra.mxu0 0.0
  %1439 = vmatprep.subr.mxu0 0.0
  %1440 = vmatpush1.msra.mxu0 0.0
  %1441 = vmatprep.subr.mxu0 0.0
  %1442 = vmatpush1.msra.mxu0 0.0
  %1443 = vmatprep.subr.mxu0 0.0
  %1444 = vmatpush1.msra.mxu0 0.0
  %1445 = vmatprep.subr.mxu0 0.0
  %1446 = vmatpush1.msra.mxu0 0.0
  %1447 = vmatprep.subr.mxu0 0.0
  %1448 = vmatpush1.msra.mxu0 0.0
  %1449 = vmatprep.subr.mxu0 0.0
  %1450 = vmatpush1.msra.mxu0 0.0
  %1451 = vmatprep.subr.mxu0 0.0
  %1452 = vmatpush1.msra.mxu0 0.0
  %1453 = vmatprep.subr.mxu0 0.0
  %1454 = vmatpush1.msra.mxu0 0.0
  %1455 = vmatprep.subr.mxu0 0.0
  %1456 = vmatpush1.msra.mxu0 0.0
  %1457 = vmatprep.subr.mxu0 0.0
  %1458 = vmatpush1.msra.mxu0 0.0
  %1459 = vmatprep.subr.mxu0 0.0
  %1460 = vmatpush1.msra.mxu0 0.0
  %1461 = vmatprep.subr.mxu0 0.0
  %1462 = vmatpush1.msra.mxu0 0.0
  %1463 = vmatprep.subr.mxu0 0.0
  %1464 = vmatpush1.msra.mxu0 0.0
  %1465 = vmatprep.subr.mxu0 0.0
  %1466 = vmatpush1.msra.mxu0 0.0
  %1467 = vmatprep.subr.mxu0 0.0
  %1468 = vmatpush1.msra.mxu0 0.0
  %1469 = vmatprep.subr.mxu0 0.0
  %1470 = vmatpush1.msra.mxu0 0.0
  %1471 = vmatprep.subr.mxu0 0.0
  %1472 = vmatpush1.msra.mxu0 0.0
  %1473 = vmatprep.subr.mxu0 0.0
  %1474 = vmatpush1.msra.mxu0 0.0
  %1475 = vmatprep.subr.mxu0 0.0
  %1476 = vmatpush1.msra.mxu0 0.0
  %1477 = vmatprep.subr.mxu0 0.0
  %1478 = vmatpush1.msra.mxu0 0.0
  %1479 = vmatprep.subr.mxu0 0.0
  %1480 = vmatpush1.msra.mxu0 0.0
  %1481 = vmatprep.subr.mxu0 0.0
  %1482 = vmatpush1.msra.mxu0 0.0
  %1483 = vmatprep.subr.mxu0 0.0
  %1484 = vmatpush1.msra.mxu0 0.0
  %1485 = vmatprep.subr.mxu0 0.0
  %1486 = vmatpush1.msra.mxu0 0.0
  %1487 = vmatprep.subr.mxu0 0.0
  %1488 = vmatpush1.msra.mxu0 0.0
  %1489 = vmatprep.mubr.f32.mxu0 0.0
  %1490 = vmatmul.mubr.f32.gmra.mrb[0].mxu0 %v1423
  %v1491 = vpop.f32.mrb[0].mxu0
  %v1492 = vadd.f32 %v1417, %v1491
  %v1493 = vpop.f32.mrb[0].mxu0
  %1494 = vdwg.mxu0
  %vm1495 = vcmask 26624
  %1496 = vst.msk [vmem:[%s6] sm:$0x7] %vm1495, %v1492
  %s1497 = scalar_lea.vmem %s6, 4
  %vm1498 = vcmask 29699
  %1499 = vst.msk [vmem:[%s1497 - $0x3] sm:$0x38] %vm1498, %v1492
  // Predicated region
  $region26: #{multi_example_rule_inference_net.1} parent=0 // pred_check
    _
  $region27: #{multi_example_rule_inference_net.1} parent=0 // pred_check_branch
    %1501 = sbr.rel (0) target = $region29
  $region28: #{multi_example_rule_inference_net.1} parent=0 // pred_region
    _
  $region29: #{multi_example_rule_inference_net.1} parent=0 // pred_fallthru
    _
  // Predicated region
  $region30: #{multi_example_rule_inference_net.1} parent=0 // pred_check
    _
  $region31: #{multi_example_rule_inference_net.1} parent=0 // pred_check_branch
    %1503 = sbr.rel (0) target = $region33
  $region32: #{multi_example_rule_inference_net.1} parent=0 // pred_region
    _
  $region33: #{multi_example_rule_inference_net.1} parent=0 // pred_fallthru
    _

</llo_original>
